<compile_context>
chip_gen: v7x
topology: tpu7x:2x2x1
jax: 0.10.0
libtpu: 0.0.40
codegen_flags: <defaults>
</compile_context>

<pallas_src>
import functools
import math

import jax
import jax.numpy as jnp
from jax.experimental import pallas as pl
from jax.experimental.pallas import tpu as pltpu

D_H1 = 256        # hidden width
D_H2 = 29         # classifier hidden width (stored zero-padded)
HEAD_PAD = 128    # lane padding used for the classifier head (29 -> 128)
D_OUT = 1
N_BLOCKS = 4      # 1 input block + n_hidden=3 blocks


def rn_clf_kernel(x_ref, w_ref, b_ref, bc2_ref, out_ref, *, d_in_pad):
    """x_ref  : (TILE_B, d_in_pad) bf16
       w_ref  : (d_in_pad + N_BLOCKS*D_H1, D_H1) bf16   packed [w0|w1|w2|w3|wc1]
       b_ref  : (8, D_H1) f32  rows 0..3 = b0..b3, 4 = bc1 (padded), 5 = wc2 row (padded)
       bc2_ref: (1, 1) f32 in SMEM  (final scalar bias)
       out_ref: (1, TILE_B) f32  (lane-dense sigmoid row)
    """
    h = x_ref[...]                                        # already bf16

    # Hidden blocks: Linear + ReLU (+ Dropout == identity at inference).
    off = 0
    k = d_in_pad
    for i in range(N_BLOCKS):
        w = w_ref[pl.ds(off, k), :]                       # static slice, bf16
        acc = jnp.dot(h, w, preferred_element_type=jnp.float32)
        h = jnp.maximum(acc + b_ref[pl.ds(i, 1), :], 0.0).astype(jnp.bfloat16)
        off += k
        k = D_H1

    # Classifier head: Linear(256, 29) + ReLU, padded only to 128 lanes
    # (one MXU pass on v5e; half the VPU/XLU work vs. a 256-wide pad).
    wc1 = w_ref[pl.ds(off, D_H1), pl.ds(0, HEAD_PAD)]     # (256, 128) bf16
    bc1 = b_ref[pl.ds(4, 1), pl.ds(0, HEAD_PAD)]          # (1, 128)  f32
    h32 = jnp.maximum(
        jnp.dot(h, wc1, preferred_element_type=jnp.float32) + bc1, 0.0)

    # Final Linear(29, 1): VPU multiply, then move the batch onto the lane axis
    # (XLU transpose) and sublane-reduce so sigmoid + store are lane-dense.
    wc2_row = b_ref[pl.ds(5, 1), pl.ds(0, HEAD_PAD)]      # (1, 128) f32, zero-padded
    prod = h32 * wc2_row                                  # (TILE_B, 128) f32
    logits = jnp.sum(prod.T, axis=0, keepdims=True) + bc2_ref[0, 0]   # (1, TILE_B)
    out_ref[...] = jax.nn.sigmoid(logits)


def rn_clf_forward(x, w_blob, b_blob, bc2, *, tile_b=512):
    """x: (B, D_in) float. Returns (B, 1) f32 sigmoid outputs."""
    B, D_in = x.shape
    d_in_pad = w_blob.shape[0] - N_BLOCKS * D_H1

    # --- batch-tile selection -------------------------------------------------
    # Bigger tiles amortize the ~0.35 us/step grid overhead, but keep >= 2 grid
    # steps when the batch allows it so both v7x TensorCores get a share.
    tile_b = max(256, (min(int(tile_b), 1024) // 256) * 256)   # align to 256
    tile_b = min(tile_b, max(256, pl.cdiv(B, 256) * 256))      # don't exceed padded B
    if pl.cdiv(B, tile_b) < 2 <= pl.cdiv(B, 256):
        tile_b = max(256, pl.cdiv(pl.cdiv(B, 2), 256) * 256)
    b_pad = pl.cdiv(B, tile_b) * tile_b

    # --- input prep: bf16 + padding (halves the D_in-scaling HBM stream) -------
    xb = x.astype(jnp.bfloat16)
    if (b_pad, d_in_pad) != (B, D_in):
        xb = jnp.pad(xb, ((0, b_pad - B), (0, d_in_pad - D_in)))

    # --- explicit VMEM budget: double-buffered x/out tiles + resident params ---
    est = (2 * tile_b * d_in_pad * 2            # bf16 x tile, double-buffered
           + 2 * tile_b * 4                     # f32 output row, double-buffered
           + 2 * int(w_blob.size) * 2           # resident bf16 weight blob (x2 bufs)
           + 2 * int(b_blob.size) * 4           # resident f32 bias blob
           + (2 << 20))                         # headroom for accumulators/spills
    vmem_limit = int(min(max(est, 16 << 20), 32 << 20))   # <= 32 MiB: v7x-safe

    grid = (b_pad // tile_b,)
    out = pl.pallas_call(
        functools.partial(rn_clf_kernel, d_in_pad=d_in_pad),
        out_shape=jax.ShapeDtypeStruct((1, b_pad), jnp.float32),
        grid=grid,
        in_specs=[
            pl.BlockSpec((tile_b, d_in_pad), lambda i: (i, 0)),   # activations: tiled
            pl.BlockSpec(w_blob.shape, lambda i: (0, 0)),         # weights : resident
            pl.BlockSpec(b_blob.shape, lambda i: (0, 0)),         # biases  : resident
            pl.BlockSpec(memory_space=pltpu.MemorySpace.SMEM),    # bc2 scalar in SMEM
        ],
        out_specs=pl.BlockSpec((1, tile_b), lambda i: (0, i)),    # lane-dense row
        compiler_params=pltpu.CompilerParams(
            dimension_semantics=("parallel",),
            vmem_limit_bytes=vmem_limit),
    )(xb, w_blob, b_blob, bc2)
    return out[0, :B].reshape(B, 1)


# --------------------------- parameter construction ---------------------------

def _xavier_uniform(key, d_in, d_out):
    # matches torch.nn.init.xavier_uniform_ on a (d_out, d_in) weight,
    # stored transposed as (d_in, d_out).
    limit = math.sqrt(6.0 / (d_in + d_out))
    return jax.random.uniform(
        key, (d_in, d_out), dtype=jnp.float32, minval=-limit, maxval=limit)


def _torch_default_bias(key, d_in, d_out):
    # PyTorch nn.Linear default bias init: U(-1/sqrt(fan_in), 1/sqrt(fan_in))
    bound = 1.0 / math.sqrt(d_in)
    return jax.random.uniform(
        key, (1, d_out), dtype=jnp.float32, minval=-bound, maxval=bound)


def make_params(key, D_in):
    """Returns (w_blob bf16, b_blob f32, bc2 f32 (1,1)) packed as in rn_clf_kernel."""
    d_in_pad = ((D_in + 127) // 128) * 128
    dims = ([(D_in, D_H1)] + [(D_H1, D_H1)] * (N_BLOCKS - 1)
            + [(D_H1, D_H2), (D_H2, D_OUT)])
    ws, bs = [], []
    for (di, do) in dims:
        key, kw, kb = jax.random.split(key, 3)
        ws.append(_xavier_uniform(kw, di, do))
        bs.append(_torch_default_bias(kb, di, do))

    # Pack weights: [w0 (padded rows) | w1 | w2 | w3 | wc1 (padded cols 29->256)]
    w0 = jnp.zeros((d_in_pad, D_H1), jnp.float32).at[:D_in, :].set(ws[0])
    wc1 = jnp.zeros((D_H1, D_H1), jnp.float32).at[:, :D_H2].set(ws[N_BLOCKS])
    w_blob = jnp.concatenate([w0] + ws[1:N_BLOCKS] + [wc1], axis=0)
    w_blob = w_blob.astype(jnp.bfloat16)

    # Pack biases + final-layer row into one (8, 256) f32 blob (only [:29] used
    # of rows 4/5; the kernel slices the first HEAD_PAD=128 lanes).
    b_blob = jnp.zeros((8, D_H1), jnp.float32)
    for i in range(N_BLOCKS):
        b_blob = b_blob.at[i, :].set(bs[i][0])
    b_blob = b_blob.at[4, :D_H2].set(bs[N_BLOCKS][0])           # bc1 (padded)
    b_blob = b_blob.at[5, :D_H2].set(ws[N_BLOCKS + 1][:, 0])    # wc2 as a row (padded)
    bc2 = bs[N_BLOCKS + 1].reshape(1, 1)                        # scalar bias -> SMEM
    return w_blob, b_blob, bc2


def reference_forward(x, w_blob, b_blob, bc2):
    """Pure-JAX reference mirroring the kernel's numerics (bf16 matmul, f32 acc)."""
    d_in_pad = w_blob.shape[0] - N_BLOCKS * D_H1
    h = jnp.pad(x.astype(jnp.bfloat16), ((0, 0), (0, d_in_pad - x.shape[1])))
    off, k = 0, d_in_pad
    for i in range(N_BLOCKS):
        acc = jnp.dot(h, w_blob[off:off + k], preferred_element_type=jnp.float32)
        h = jnp.maximum(acc + b_blob[i:i + 1], 0.0).astype(jnp.bfloat16)
        off += k
        k = D_H1
    h32 = jnp.maximum(
        jnp.dot(h, w_blob[off:off + D_H1, :HEAD_PAD],
                preferred_element_type=jnp.float32)
        + b_blob[4:5, :HEAD_PAD], 0.0)
    logits = jnp.sum(h32 * b_blob[5:6, :HEAD_PAD], axis=-1, keepdims=True) + bc2[0, 0]
    return jax.nn.sigmoid(logits)


if __name__ == "__main__":
    B, D_in = 512, 64
    key = jax.random.PRNGKey(0)
    kx, kp = jax.random.split(key)

    x = jax.random.normal(kx, (B, D_in), dtype=jnp.float32)
    w_blob, b_blob, bc2 = make_params(kp, D_in)

    out = rn_clf_forward(x, w_blob, b_blob, bc2, tile_b=512)
    out = jax.block_until_ready(out)

    assert out.shape == (B, 1), out.shape
    assert bool(jnp.all(jnp.isfinite(out)))
    assert bool(jnp.all((out >= 0.0) & (out <= 1.0)))

    ref = reference_forward(x, w_blob, b_blob, bc2)
    max_err = float(jnp.max(jnp.abs(out - ref)))
    assert max_err < 2e-2, f"max abs err vs reference = {max_err}"

    print("KERNEL_OK")
</pallas_src>

<mosaic_0001>
module attributes {stable_mosaic.version = 11 : i64} {
  func.func @rn_clf_kernel(%arg0: i32, %arg1: memref<256x128xbf16, #tpu.memory_space<vmem>>, %arg2: memref<1152x256xbf16, #tpu.memory_space<vmem>>, %arg3: memref<8x256xf32, #tpu.memory_space<vmem>>, %arg4: memref<1x1xf32, #tpu.memory_space<smem>>, %arg5: memref<1x256xf32, #tpu.memory_space<vmem>>) attributes {dimension_semantics = [#tpu.dimension_semantics<parallel>], iteration_bounds = array<i64: 2>, scalar_prefetch = 0 : i64, scratch_operands = 0 : i64, tpu.core_type = #tpu.core_type<tc>, window_params = [{transform_indices = @transform_0, window_bounds = array<i64: 256, 128>}, {pipeline_mode = #tpu.pipeline_mode<synchronous>, transform_indices = @transform_1, window_bounds = array<i64: 1152, 256>}, {pipeline_mode = #tpu.pipeline_mode<synchronous>, transform_indices = @transform_2, window_bounds = array<i64: 8, 256>}, {transform_indices = @transform_3, window_bounds = array<i64: 1, 1>}, {transform_indices = @transform_4, window_bounds = array<i64: 1, 256>}]} {
    %c0 = arith.constant 0 : index
    %c0_0 = arith.constant 0 : index
    %0 = vector.load %arg1[%c0, %c0_0] : memref<256x128xbf16, #tpu.memory_space<vmem>>, vector<256x128xbf16>
    %c0_1 = arith.constant 0 : index
    %c0_2 = arith.constant 0 : index
    %1 = vector.load %arg2[%c0_1, %c0_2] : memref<1152x256xbf16, #tpu.memory_space<vmem>>, vector<128x256xbf16>
    %cst = arith.constant dense<0.000000e+00> : vector<256x256xf32>
    %2 = tpu.matmul %0, %1, %cst {dimension_numbers = #tpu.dot_dimension_numbers<[1], [0], [0], [1], [0, 0, 1, 1], [], []>} : vector<256x128xbf16>, vector<128x256xbf16>, vector<256x256xf32> -> vector<256x256xf32>
    %c0_3 = arith.constant 0 : index
    %c0_4 = arith.constant 0 : index
    %3 = vector.load %arg3[%c0_3, %c0_4] : memref<8x256xf32, #tpu.memory_space<vmem>>, vector<1x256xf32>
    %4 = vector.broadcast %3 : vector<1x256xf32> to vector<256x256xf32>
    %5 = arith.addf %2, %4 : vector<256x256xf32>
    %cst_5 = arith.constant 0.000000e+00 : f32
    %6 = vector.broadcast %cst_5 : f32 to vector<256x256xf32>
    %7 = arith.maximumf %5, %6 : vector<256x256xf32>
    %8 = arith.truncf %7 : vector<256x256xf32> to vector<256x256xbf16>
    %c128 = arith.constant 128 : index
    %c0_6 = arith.constant 0 : index
    %9 = vector.load %arg2[%c128, %c0_6] : memref<1152x256xbf16, #tpu.memory_space<vmem>>, vector<256x256xbf16>
    %cst_7 = arith.constant dense<0.000000e+00> : vector<256x256xf32>
    %10 = tpu.matmul %8, %9, %cst_7 {dimension_numbers = #tpu.dot_dimension_numbers<[1], [0], [0], [1], [0, 0, 1, 1], [], []>} : vector<256x256xbf16>, vector<256x256xbf16>, vector<256x256xf32> -> vector<256x256xf32>
    %c1 = arith.constant 1 : index
    %c0_8 = arith.constant 0 : index
    %11 = vector.load %arg3[%c1, %c0_8] : memref<8x256xf32, #tpu.memory_space<vmem>>, vector<1x256xf32>
    %12 = vector.broadcast %11 : vector<1x256xf32> to vector<256x256xf32>
    %13 = arith.addf %10, %12 : vector<256x256xf32>
    %cst_9 = arith.constant 0.000000e+00 : f32
    %14 = vector.broadcast %cst_9 : f32 to vector<256x256xf32>
    %15 = arith.maximumf %13, %14 : vector<256x256xf32>
    %16 = arith.truncf %15 : vector<256x256xf32> to vector<256x256xbf16>
    %c384 = arith.constant 384 : index
    %c0_10 = arith.constant 0 : index
    %17 = vector.load %arg2[%c384, %c0_10] : memref<1152x256xbf16, #tpu.memory_space<vmem>>, vector<256x256xbf16>
    %cst_11 = arith.constant dense<0.000000e+00> : vector<256x256xf32>
    %18 = tpu.matmul %16, %17, %cst_11 {dimension_numbers = #tpu.dot_dimension_numbers<[1], [0], [0], [1], [0, 0, 1, 1], [], []>} : vector<256x256xbf16>, vector<256x256xbf16>, vector<256x256xf32> -> vector<256x256xf32>
    %c2 = arith.constant 2 : index
    %c0_12 = arith.constant 0 : index
    %19 = vector.load %arg3[%c2, %c0_12] : memref<8x256xf32, #tpu.memory_space<vmem>>, vector<1x256xf32>
    %20 = vector.broadcast %19 : vector<1x256xf32> to vector<256x256xf32>
    %21 = arith.addf %18, %20 : vector<256x256xf32>
    %cst_13 = arith.constant 0.000000e+00 : f32
    %22 = vector.broadcast %cst_13 : f32 to vector<256x256xf32>
    %23 = arith.maximumf %21, %22 : vector<256x256xf32>
    %24 = arith.truncf %23 : vector<256x256xf32> to vector<256x256xbf16>
    %c640 = arith.constant 640 : index
    %c0_14 = arith.constant 0 : index
    %25 = vector.load %arg2[%c640, %c0_14] : memref<1152x256xbf16, #tpu.memory_space<vmem>>, vector<256x256xbf16>
    %cst_15 = arith.constant dense<0.000000e+00> : vector<256x256xf32>
    %26 = tpu.matmul %24, %25, %cst_15 {dimension_numbers = #tpu.dot_dimension_numbers<[1], [0], [0], [1], [0, 0, 1, 1], [], []>} : vector<256x256xbf16>, vector<256x256xbf16>, vector<256x256xf32> -> vector<256x256xf32>
    %c3 = arith.constant 3 : index
    %c0_16 = arith.constant 0 : index
    %27 = vector.load %arg3[%c3, %c0_16] : memref<8x256xf32, #tpu.memory_space<vmem>>, vector<1x256xf32>
    %28 = vector.broadcast %27 : vector<1x256xf32> to vector<256x256xf32>
    %29 = arith.addf %26, %28 : vector<256x256xf32>
    %cst_17 = arith.constant 0.000000e+00 : f32
    %30 = vector.broadcast %cst_17 : f32 to vector<256x256xf32>
    %31 = arith.maximumf %29, %30 : vector<256x256xf32>
    %32 = arith.truncf %31 : vector<256x256xf32> to vector<256x256xbf16>
    %c896 = arith.constant 896 : index
    %c0_18 = arith.constant 0 : index
    %33 = vector.load %arg2[%c896, %c0_18] : memref<1152x256xbf16, #tpu.memory_space<vmem>>, vector<256x128xbf16>
    %c4 = arith.constant 4 : index
    %c0_19 = arith.constant 0 : index
    %34 = vector.load %arg3[%c4, %c0_19] : memref<8x256xf32, #tpu.memory_space<vmem>>, vector<1x128xf32>
    %cst_20 = arith.constant dense<0.000000e+00> : vector<256x128xf32>
    %35 = tpu.matmul %32, %33, %cst_20 {dimension_numbers = #tpu.dot_dimension_numbers<[1], [0], [0], [1], [0, 0, 1, 1], [], []>} : vector<256x256xbf16>, vector<256x128xbf16>, vector<256x128xf32> -> vector<256x128xf32>
    %36 = vector.broadcast %34 : vector<1x128xf32> to vector<256x128xf32>
    %37 = arith.addf %35, %36 : vector<256x128xf32>
    %cst_21 = arith.constant 0.000000e+00 : f32
    %38 = vector.broadcast %cst_21 : f32 to vector<256x128xf32>
    %39 = arith.maximumf %37, %38 : vector<256x128xf32>
    %c5 = arith.constant 5 : index
    %c0_22 = arith.constant 0 : index
    %40 = vector.load %arg3[%c5, %c0_22] : memref<8x256xf32, #tpu.memory_space<vmem>>, vector<1x128xf32>
    %41 = vector.broadcast %40 : vector<1x128xf32> to vector<256x128xf32>
    %42 = arith.mulf %39, %41 : vector<256x128xf32>
    %43 = tpu.transpose %42, [1, 0] : vector<256x128xf32> -> vector<128x256xf32>
    %cst_23 = arith.constant dense<0.000000e+00> : vector<256xf32>
    %44 = vector.multi_reduction <add>, %43, %cst_23 [0] : vector<128x256xf32> to vector<256xf32>
    %45 = vector.shape_cast %44 : vector<256xf32> to vector<1x256xf32>
    %c0_24 = arith.constant 0 : index
    %c0_25 = arith.constant 0 : index
    %46 = memref.load %arg4[%c0_24, %c0_25] : memref<1x1xf32, #tpu.memory_space<smem>>
    %47 = vector.broadcast %46 : f32 to vector<1x256xf32>
    %48 = arith.addf %45, %47 : vector<1x256xf32>
    %49 = arith.negf %48 : vector<1x256xf32>
    %50 = math.exp %49 : vector<1x256xf32>
    %cst_26 = arith.constant 1.000000e+00 : f32
    %51 = vector.broadcast %cst_26 : f32 to vector<1x256xf32>
    %52 = arith.addf %51, %50 : vector<1x256xf32>
    %53 = arith.divf %51, %52 : vector<1x256xf32>
    %c0_27 = arith.constant 0 : index
    %c0_28 = arith.constant 0 : index
    %54 = vector.load %arg5[%c0_27, %c0_28] : memref<1x256xf32, #tpu.memory_space<vmem>>, vector<1x256xf32>
    tpu.vector_store %arg5[%c0_27, %c0_28], %53 {strides = array<i32>} : memref<1x256xf32, #tpu.memory_space<vmem>>, vector<1x256xf32>,
    return
  }
  func.func @transform_0(%arg0: i32) -> (i32, i32) {
    %c0_i32 = arith.constant 0 : i32
    %c0_i32_0 = arith.constant 0 : i32
    return %arg0, %c0_i32 : i32, i32
  }
  func.func @transform_1(%arg0: i32) -> (i32, i32) {
    %c0_i32 = arith.constant 0 : i32
    %c0_i32_0 = arith.constant 0 : i32
    %c0_i32_1 = arith.constant 0 : i32
    return %c0_i32, %c0_i32_0 : i32, i32
  }
  func.func @transform_2(%arg0: i32) -> (i32, i32) {
    %c0_i32 = arith.constant 0 : i32
    %c0_i32_0 = arith.constant 0 : i32
    %c0_i32_1 = arith.constant 0 : i32
    return %c0_i32, %c0_i32_0 : i32, i32
  }
  func.func @transform_3(%arg0: i32) -> (i32, i32) {
    %c0_i32 = arith.constant 0 : i32
    %c0_i32_0 = arith.constant 0 : i32
    %c0_i32_1 = arith.constant 0 : i32
    return %c0_i32, %c0_i32_0 : i32, i32
  }
  func.func @transform_4(%arg0: i32) -> (i32, i32) {
    %c0_i32 = arith.constant 0 : i32
    %c0_i32_0 = arith.constant 0 : i32
    return %c0_i32, %arg0 : i32, i32
  }
}

</mosaic_0001>

<llo_original>
// kernel: tpu_custom_call.1
$region0: #{tpu_custom_call.1}
  #allocation0 [shape = 'u32[]', space=smem, size = 0x4, offset = 0x4, fixed_abs, tag = 'smem constant byte address 0x4 - core index']
  #allocation1 [shape = 'u32[144,128]{1,0:T(1,128)}', space=vmem, size = 0x12000, scoped, tag = 'internal scratch']
  #allocation2 [shape = 'f32[1,1]{1,0:T(1,128)S(6)}', space=smem, size = 0x200, scoped, tag = 'scoped memory for tpu_custom_call.1']
  %s0 = inlined_call_operand.hbm [shape: bf16[512,128], index: 0, kind: input, shape index: {}]
  %s1 = inlined_call_operand.hbm [shape: bf16[1152,256], index: 1, kind: input, shape index: {}]
  %s2 = inlined_call_operand.hbm [shape: f32[8,256], index: 2, kind: input, shape index: {}]
  %s3 = inlined_call_operand.<no memory space> [shape: f32[1,1], index: 3, kind: input, shape index: {}]
  %s4 = inlined_call_operand.hbm [shape: f32[1,512], index: 4, kind: output, shape index: {}]
  %s5 = sld [smem:[#allocation0]]
  $region61: #{tpu_custom_call.1} parent=0
    _
  %s7 = ssub.s32 1, %s5
  %s8 = scalar_select 0, %s7, %s5
  %9 = sst [smem:[#allocation2]] %s3
  $region1: #{tpu_custom_call.1} parent=0
    #allocation3 [shape = 'u8[131072]{0}', space=vmem, size = 0x20000, scoped, tag = 'input window, operand 0']
    #allocation4 [shape = 's32[2]{0}', space=sflag, size = 0x8, scoped, tag = 'scoped memory for tpu_custom_call.1']
    #allocation5 [shape = 's32[2]{0}', space=sflag, size = 0x8, scoped, tag = 'scoped memory for tpu_custom_call.1']
    #allocation6 [shape = 'u8[589824]{0}', space=vmem, size = 0x90000, scoped, tag = 'input window, operand 1, single buffered']
    #allocation7 [shape = 's32[1]{0}', space=sflag, size = 0x4, scoped, tag = 'scoped memory for tpu_custom_call.1']
    #allocation8 [shape = 'u8[8192]{0}', space=vmem, size = 0x2000, scoped, tag = 'input window, operand 2, single buffered']
    #allocation9 [shape = 'u8[2048]{0}', space=vmem, size = 0x800, scoped, tag = 'output window, operand 0']
    %10 = vsyncpa [#allocation4], 0
    %s11 = scalar_lea.sflag [#allocation4], 1
    %12 = vsyncpa %s11, 0
    %13 = vsyncpa [#allocation7], 0
    %14 = vsyncpa [#allocation5], 0
    %s15 = scalar_lea.sflag [#allocation5], 1
    %16 = vsyncpa %s15, 0
    loop: start=0, step=1, limit=4
    $region2: #{tpu_custom_call.1} parent=1 // loop_pre_header
      _
    $region3: #{tpu_custom_call.1} parent=1 // loop_header
      %s18 = sphi 0, %s22
      %p19 = scmp.ge.s32.totalorder %s18, 4
      %s28 = sphi 0, %s30
      %s31 = sphi 0, %s28
      %s32 = sphi 0, %s31
      %s48 = sphi 0, %s32
      %s52 = sphi 0, %s52
      %s54 = sphi 0, %s52
      %s55 = sphi 0, %s54
      %s69 = sphi 0, %s55
      %s73 = sphi 0, %s73
      %s75 = sphi 0, %s73
      %s76 = sphi 0, %s75
      %s90 = sphi 0, %s76
      %s94 = sphi 0, %s94
      %s96 = sphi 0, %s94
      %s97 = sphi 0, %s96
      %s111 = sphi 0, %s97
      %s117 = sphi 0, %s119
      %s120 = sphi 0, %s117
      %s121 = sphi 0, %s120
      %s137 = sphi 0, %s121
    $region4: #{tpu_custom_call.1} parent=1 // loop_header_branch
      %21 = sbr.rel (%p19) target = $region8
    $region5: #{tpu_custom_call.1} parent=1 // loop_body
      %s23 = ssub.s32 %s18, 1
      %s24 = ssub.s32 %s18, 2
      %s25 = sadd.s32 %s18, 1
      %s26 = ssub.s32 %s18, %s25
      %p27 = scmp.eq.s32.totalorder %s26, 0
      %s29 = sadd.s32 %s28, 1
      %s30 = scalar_select %p27, %s28, %s29
      %p33 = pneg %p27
      %p34 = scmp.eq.s32.totalorder %s18, 1
      %p35 = por %p33, %p34
      %p36 = scmp.ne.s32.totalorder %s28, %s31
      %p37 = scmp.eq.s32.totalorder %s18, 0
      %p38 = por %p36, %p37
      %p39 = scmp.ne.s32.totalorder %s28, %s31
      %p40 = scmp.eq.s32.totalorder %s23, 1
      %p41 = por %p39, %p40
      %p42 = scmp.ne.s32.totalorder %s31, %s32
      %p43 = scmp.eq.s32.totalorder %s23, 0
      %p44 = por %p42, %p43
      %p45 = scmp.ne.s32.totalorder %s31, %s32
      %p46 = scmp.eq.s32.totalorder %s24, 1
      %p47 = por %p45, %p46
      %p49 = scmp.ne.s32.totalorder %s32, %s48
      %p50 = scmp.eq.s32.totalorder %s24, 0
      %p51 = por %p49, %p50
      %s53 = sadd.s32 %s52, 1
      %p56 = scmp.eq.s32.totalorder %s18, 1
      %p57 = scmp.ne.s32.totalorder %s52, %s54
      %p58 = scmp.eq.s32.totalorder %s18, 0
      %p59 = por %p57, %p58
      %p60 = scmp.ne.s32.totalorder %s52, %s54
      %p61 = scmp.eq.s32.totalorder %s23, 1
      %p62 = por %p60, %p61
      %p63 = scmp.ne.s32.totalorder %s54, %s55
      %p64 = scmp.eq.s32.totalorder %s23, 0
      %p65 = por %p63, %p64
      %p66 = scmp.ne.s32.totalorder %s54, %s55
      %p67 = scmp.eq.s32.totalorder %s24, 1
      %p68 = por %p66, %p67
      %p70 = scmp.ne.s32.totalorder %s55, %s69
      %p71 = scmp.eq.s32.totalorder %s24, 0
      %p72 = por %p70, %p71
      %s74 = sadd.s32 %s73, 1
      %p77 = scmp.eq.s32.totalorder %s18, 1
      %p78 = scmp.ne.s32.totalorder %s73, %s75
      %p79 = scmp.eq.s32.totalorder %s18, 0
      %p80 = por %p78, %p79
      %p81 = scmp.ne.s32.totalorder %s73, %s75
      %p82 = scmp.eq.s32.totalorder %s23, 1
      %p83 = por %p81, %p82
      %p84 = scmp.ne.s32.totalorder %s75, %s76
      %p85 = scmp.eq.s32.totalorder %s23, 0
      %p86 = por %p84, %p85
      %p87 = scmp.ne.s32.totalorder %s75, %s76
      %p88 = scmp.eq.s32.totalorder %s24, 1
      %p89 = por %p87, %p88
      %p91 = scmp.ne.s32.totalorder %s76, %s90
      %p92 = scmp.eq.s32.totalorder %s24, 0
      %p93 = por %p91, %p92
      %s95 = sadd.s32 %s94, 1
      %p98 = scmp.eq.s32.totalorder %s18, 1
      %p99 = scmp.ne.s32.totalorder %s94, %s96
      %p100 = scmp.eq.s32.totalorder %s18, 0
      %p101 = por %p99, %p100
      %p102 = scmp.ne.s32.totalorder %s94, %s96
      %p103 = scmp.eq.s32.totalorder %s23, 1
      %p104 = por %p102, %p103
      %p105 = scmp.ne.s32.totalorder %s96, %s97
      %p106 = scmp.eq.s32.totalorder %s23, 0
      %p107 = por %p105, %p106
      %p108 = scmp.ne.s32.totalorder %s96, %s97
      %p109 = scmp.eq.s32.totalorder %s24, 1
      %p110 = por %p108, %p109
      %p112 = scmp.ne.s32.totalorder %s97, %s111
      %p113 = scmp.eq.s32.totalorder %s24, 0
      %p114 = por %p112, %p113
      %s115 = ssub.s32 %s18, %s25
      %p116 = scmp.eq.s32.totalorder %s115, 0
      %s118 = sadd.s32 %s117, 1
      %s119 = scalar_select %p116, %s117, %s118
      %p122 = pneg %p116
      %p123 = scmp.eq.s32.totalorder %s18, 1
      %p124 = por %p122, %p123
      %p125 = scmp.ne.s32.totalorder %s117, %s120
      %p126 = scmp.eq.s32.totalorder %s18, 0
      %p127 = por %p125, %p126
      %p128 = scmp.ne.s32.totalorder %s117, %s120
      %p129 = scmp.eq.s32.totalorder %s23, 1
      %p130 = por %p128, %p129
      %p131 = scmp.ne.s32.totalorder %s120, %s121
      %p132 = scmp.eq.s32.totalorder %s23, 0
      %p133 = por %p131, %p132
      %p134 = scmp.ne.s32.totalorder %s120, %s121
      %p135 = scmp.eq.s32.totalorder %s24, 1
      %p136 = por %p134, %p135
      %p138 = scmp.ne.s32.totalorder %s121, %s137
      %p139 = scmp.eq.s32.totalorder %s24, 0
      %p140 = por %p138, %p139
      %p141 = scmp.le.s32.totalorder 1, %s18
      %p142 = scmp.lt.s32.totalorder %s18, 3
      %p143 = pnand %p141, %p142
      %p144 = pneg %p143
      // Predicated region
      $region9: #{tpu_custom_call.1} parent=5 // pred_check
        _
      $region10: #{tpu_custom_call.1} parent=5 // pred_check_branch
        %146 = sbr.rel (%p143) target = $region12
      $region11: #{tpu_custom_call.1} parent=5 // pred_region
        %s147 = ssub.s32 %s18, 1
        // Predicated region
        $region13: #{tpu_custom_call.1} parent=11 // pred_check
          %p148 = pneg %p65
        $region14: #{tpu_custom_call.1} parent=11 // pred_check_branch
          %150 = sbr.rel (%p148) target = $region16
        $region15: #{tpu_custom_call.1} parent=11 // pred_region
          %s152 = ssub.s32 18432, 18432
          %153 = vsyncadd [#allocation7], %s152
          %s154 = sshll.u32 [#allocation6], 4
          %s155 = int_to_ptr.vmem [resolvable:$true] %s154
          %160 = dma.hbm_to_vmem [thread:$0]  %s1, 18432, %s155, [#allocation7], 128, 128, 8
        $region16: #{tpu_custom_call.1} parent=11 // pred_fallthru
          _
        // Predicated region
        $region17: #{tpu_custom_call.1} parent=11 // pred_check
          %p161 = pneg %p86
        $region18: #{tpu_custom_call.1} parent=11 // pred_check_branch
          %163 = sbr.rel (%p161) target = $region20
        $region19: #{tpu_custom_call.1} parent=11 // pred_region
          %s165 = ssub.s32 256, 256
          %166 = vsyncadd [#allocation7], %s165
          %s168 = sshll.u32 [#allocation8], 4
          %s169 = int_to_ptr.vmem [resolvable:$true] %s168
          %171 = dma.hbm_to_vmem [thread:$0]  %s2, 256, %s169, [#allocation7]
        $region20: #{tpu_custom_call.1} parent=11 // pred_fallthru
          _
        // Predicated region
        $region21: #{tpu_custom_call.1} parent=11 // pred_check
          %p172 = pneg %p107
        $region22: #{tpu_custom_call.1} parent=11 // pred_check_branch
          %174 = sbr.rel (%p172) target = $region24
        $region23: #{tpu_custom_call.1} parent=11 // pred_region
          _
        $region24: #{tpu_custom_call.1} parent=11 // pred_fallthru
          _
      $region12: #{tpu_custom_call.1} parent=5 // pred_fallthru
        _
      %p175 = scmp.lt.s32.totalorder %s18, 2
      // Predicated region
      $region25: #{tpu_custom_call.1} parent=5 // pred_check
        %p176 = pneg %p175
      $region26: #{tpu_custom_call.1} parent=5 // pred_check_branch
        %178 = sbr.rel (%p176) target = $region28
      $region27: #{tpu_custom_call.1} parent=5 // pred_region
        // Predicated region
        $region29: #{tpu_custom_call.1} parent=27 // pred_check
          %p179 = pneg %p38
        $region30: #{tpu_custom_call.1} parent=27 // pred_check_branch
          %181 = sbr.rel (%p179) target = $region32
        $region31: #{tpu_custom_call.1} parent=27 // pred_region
          %s182 = sand.u32 %s28, 1
          %s183 = scalar_lea.sflag [#allocation4], %s182
          %s184 = sand.u32 %s28, 1
          %s185 = smul.addr %s184, 128
          %s186 = scalar_lea.vmem [#allocation3], %s185
          %s187 = smul.u32 32, %s18
          %s189 = ssub.s32 2048, 2048
          %190 = vsyncadd %s183, %s189
          %s191 = smul.addr %s187, 64
          %s192 = scalar_lea.hbm %s0, %s191
          %s193 = sshll.u32 %s186, 4
          %s194 = int_to_ptr.vmem [resolvable:$true] %s193
          %199 = dma.hbm_to_vmem [thread:$0]  %s192, 2048, %s194, %s183, 64, 64, 4
        $region32: #{tpu_custom_call.1} parent=27 // pred_fallthru
          _
      $region28: #{tpu_custom_call.1} parent=5 // pred_fallthru
        _
      %p200 = scmp.le.s32.totalorder 1, %s18
      %p201 = scmp.lt.s32.totalorder %s18, 3
      %p202 = pnand %p200, %p201
      %p203 = pneg %p202
      // Predicated region
      $region33: #{tpu_custom_call.1} parent=5 // pred_check
        _
      $region34: #{tpu_custom_call.1} parent=5 // pred_check_branch
        %205 = sbr.rel (%p202) target = $region36
      $region35: #{tpu_custom_call.1} parent=5 // pred_region
        %s206 = ssub.s32 %s18, 1
        %s207 = sand.u32 %s31, 1
        %s208 = scalar_lea.sflag [#allocation4], %s207
        %s209 = sand.u32 %s31, 1
        %s210 = smul.addr %s209, 128
        %s211 = scalar_lea.vmem [#allocation3], %s210
        // Predicated region
        $region37: #{tpu_custom_call.1} parent=35 // pred_check
          %p212 = pneg %p44
        $region38: #{tpu_custom_call.1} parent=35 // pred_check_branch
          %214 = sbr.rel (%p212) target = $region40
        $region39: #{tpu_custom_call.1} parent=35 // pred_region
          %215 = dma.done %s208, 2048
        $region40: #{tpu_custom_call.1} parent=35 // pred_fallthru
          _
        // Predicated region
        $region41: #{tpu_custom_call.1} parent=35 // pred_check
          %p216 = pneg %p65
        $region42: #{tpu_custom_call.1} parent=35 // pred_check_branch
          %218 = sbr.rel (%p216) target = $region44
        $region43: #{tpu_custom_call.1} parent=35 // pred_region
          %219 = dma.done [#allocation7], 18432
        $region44: #{tpu_custom_call.1} parent=35 // pred_fallthru
          _
        // Predicated region
        $region45: #{tpu_custom_call.1} parent=35 // pred_check
          %p220 = pneg %p86
        $region46: #{tpu_custom_call.1} parent=35 // pred_check_branch
          %222 = sbr.rel (%p220) target = $region48
        $region47: #{tpu_custom_call.1} parent=35 // pred_region
          %223 = dma.done [#allocation7], 256
        $region48: #{tpu_custom_call.1} parent=35 // pred_fallthru
          _
        %s224 = sand.u32 %s31, 1
        %s225 = scalar_lea.sflag [#allocation4], %s224
        %s226 = sand.u32 %s31, 1
        %s227 = smul.addr %s226, 128
        %s228 = scalar_lea.vmem [#allocation3], %s227
        %p229 = pneg %p44
        %p230 = pneg %p41
        %p231 = pneg %p65
        %p232 = pneg %p62
        %p233 = pneg %p86
        %p234 = pneg %p83
        %p235 = pneg %p107
        %p236 = pneg %p104
        %p237 = pneg %p133
        %p238 = pneg %p130
        %s239 = sand.u32 %s120, 1
        %s240 = scalar_lea.sflag [#allocation5], %s239
        %s241 = sand.u32 %s120, 1
        %s242 = smul.addr %s241, 2
        %s243 = scalar_lea.vmem [#allocation9], %s242
        %s244 = smul.u32 32, %s23
        %s245 = smul.u32 2, %s23
        %v247 = vld [vmem:[%s211] sm:$0xf]
        %v248 = vld [vmem:[%s211 + $0x4] sm:$0xf]
        %v249 = vld [vmem:[%s211 + $0x8] sm:$0xf]
        %v250 = vld [vmem:[%s211 + $0xc] sm:$0xf]
        %v251 = vld [vmem:[%s211 + $0x10] sm:$0xf]
        %v252 = vld [vmem:[%s211 + $0x14] sm:$0xf]
        %v253 = vld [vmem:[%s211 + $0x18] sm:$0xf]
        %v254 = vld [vmem:[%s211 + $0x1c] sm:$0xf]
        %v255 = vld [vmem:[%s211 + $0x20] sm:$0xf]
        %v256 = vld [vmem:[%s211 + $0x24] sm:$0xf]
        %v257 = vld [vmem:[%s211 + $0x28] sm:$0xf]
        %v258 = vld [vmem:[%s211 + $0x2c] sm:$0xf]
        %v259 = vld [vmem:[%s211 + $0x30] sm:$0xf]
        %v260 = vld [vmem:[%s211 + $0x34] sm:$0xf]
        %v261 = vld [vmem:[%s211 + $0x38] sm:$0xf]
        %v262 = vld [vmem:[%s211 + $0x3c] sm:$0xf]
        %v263 = vld [vmem:[%s211 + $0x40] sm:$0xf]
        %v264 = vld [vmem:[%s211 + $0x44] sm:$0xf]
        %v265 = vld [vmem:[%s211 + $0x48] sm:$0xf]
        %v266 = vld [vmem:[%s211 + $0x4c] sm:$0xf]
        %v267 = vld [vmem:[%s211 + $0x50] sm:$0xf]
        %v268 = vld [vmem:[%s211 + $0x54] sm:$0xf]
        %v269 = vld [vmem:[%s211 + $0x58] sm:$0xf]
        %v270 = vld [vmem:[%s211 + $0x5c] sm:$0xf]
        %v271 = vld [vmem:[%s211 + $0x60] sm:$0xf]
        %v272 = vld [vmem:[%s211 + $0x64] sm:$0xf]
        %v273 = vld [vmem:[%s211 + $0x68] sm:$0xf]
        %v274 = vld [vmem:[%s211 + $0x6c] sm:$0xf]
        %v275 = vld [vmem:[%s211 + $0x70] sm:$0xf]
        %v276 = vld [vmem:[%s211 + $0x74] sm:$0xf]
        %v277 = vld [vmem:[%s211 + $0x78] sm:$0xf]
        %v278 = vld [vmem:[%s211 + $0x7c] sm:$0xf]
        %v279 = vld [vmem:[#allocation6] sm:$0xff]
        %v280 = vld [vmem:[#allocation6 + $0x8] sm:$0xff]
        %v281 = vld [vmem:[#allocation6 + $0x10] sm:$0xff]
        %v282 = vld [vmem:[#allocation6 + $0x18] sm:$0xff]
        %v283 = vld [vmem:[#allocation6 + $0x20] sm:$0xff]
        %v284 = vld [vmem:[#allocation6 + $0x28] sm:$0xff]
        %v285 = vld [vmem:[#allocation6 + $0x30] sm:$0xff]
        %v286 = vld [vmem:[#allocation6 + $0x38] sm:$0xff]
        %v287 = vld [vmem:[#allocation6 + $0x40] sm:$0xff]
        %v288 = vld [vmem:[#allocation6 + $0x48] sm:$0xff]
        %v289 = vld [vmem:[#allocation6 + $0x50] sm:$0xff]
        %v290 = vld [vmem:[#allocation6 + $0x58] sm:$0xff]
        %v291 = vld [vmem:[#allocation6 + $0x60] sm:$0xff]
        %v292 = vld [vmem:[#allocation6 + $0x68] sm:$0xff]
        %v293 = vld [vmem:[#allocation6 + $0x70] sm:$0xff]
        %v294 = vld [vmem:[#allocation6 + $0x78] sm:$0xff]
        %v295 = vld [vmem:[#allocation8] ss:$8 sm:$0x3]
        %v297 = vlaneseq
        %v298 = vshrl.u32 %v297, 7
        %v299 = vsub.s32 0, %v298
        %v300 = vrot.slane %v295, %v299
        %v301 = vlaneseq
        %v302 = vshrl.u32 %v301, 7
        %v303 = vsub.s32 1, %v302
        %v304 = vrot.slane %v295, %v303
        %v339 = vunpack.c.l.b16 %v247
        %v340 = vunpack.c.l.b16 %v248
        %v341 = vunpack.c.l.b16 %v249
        %v342 = vunpack.c.l.b16 %v250
        %v343 = vunpack.c.l.b16 %v251
        %v344 = vunpack.c.l.b16 %v252
        %v345 = vunpack.c.l.b16 %v253
        %v346 = vunpack.c.l.b16 %v254
        %v347 = vunpack.c.l.b16 %v255
        %v348 = vunpack.c.l.b16 %v256
        %v349 = vunpack.c.l.b16 %v257
        %v350 = vunpack.c.l.b16 %v258
        %v351 = vunpack.c.l.b16 %v259
        %v352 = vunpack.c.l.b16 %v260
        %v353 = vunpack.c.l.b16 %v261
        %v354 = vunpack.c.l.b16 %v262
        %v355 = vunpack.c.l.b16 %v263
        %v356 = vunpack.c.l.b16 %v264
        %v357 = vunpack.c.l.b16 %v265
        %v358 = vunpack.c.l.b16 %v266
        %v359 = vunpack.c.l.b16 %v267
        %v360 = vunpack.c.l.b16 %v268
        %v361 = vunpack.c.l.b16 %v269
        %v362 = vunpack.c.l.b16 %v270
        %v363 = vunpack.c.l.b16 %v271
        %v364 = vunpack.c.l.b16 %v272
        %v365 = vunpack.c.l.b16 %v273
        %v366 = vunpack.c.l.b16 %v274
        %v367 = vunpack.c.l.b16 %v275
        %v368 = vunpack.c.l.b16 %v276
        %v369 = vunpack.c.l.b16 %v277
        %v370 = vunpack.c.l.b16 %v278
        %v371 = vpack.c.b16 %v340, %v339
        %v372 = vpack.c.b16 %v342, %v341
        %v373 = vpack.c.b16 %v344, %v343
        %v374 = vpack.c.b16 %v346, %v345
        %v375 = vpack.c.b16 %v348, %v347
        %v376 = vpack.c.b16 %v350, %v349
        %v377 = vpack.c.b16 %v352, %v351
        %v378 = vpack.c.b16 %v354, %v353
        %v379 = vpack.c.b16 %v356, %v355
        %v380 = vpack.c.b16 %v358, %v357
        %v381 = vpack.c.b16 %v360, %v359
        %v382 = vpack.c.b16 %v362, %v361
        %v383 = vpack.c.b16 %v364, %v363
        %v384 = vpack.c.b16 %v366, %v365
        %v385 = vpack.c.b16 %v368, %v367
        %v386 = vpack.c.b16 %v370, %v369
        %v419 = vunpack.c.l.b16 %v279
        %v420 = vunpack.c.h.b16 %v279
        %v421 = vunpack.c.l.b16 %v280
        %v422 = vunpack.c.h.b16 %v280
        %v423 = vunpack.c.l.b16 %v281
        %v424 = vunpack.c.h.b16 %v281
        %v425 = vunpack.c.l.b16 %v282
        %v426 = vunpack.c.h.b16 %v282
        %v427 = vunpack.c.l.b16 %v283
        %v428 = vunpack.c.h.b16 %v283
        %v429 = vunpack.c.l.b16 %v284
        %v430 = vunpack.c.h.b16 %v284
        %v431 = vunpack.c.l.b16 %v285
        %v432 = vunpack.c.h.b16 %v285
        %v433 = vunpack.c.l.b16 %v286
        %v434 = vunpack.c.h.b16 %v286
        %v435 = vunpack.c.l.b16 %v287
        %v436 = vunpack.c.h.b16 %v287
        %v437 = vunpack.c.l.b16 %v288
        %v438 = vunpack.c.h.b16 %v288
        %v439 = vunpack.c.l.b16 %v289
        %v440 = vunpack.c.h.b16 %v289
        %v441 = vunpack.c.l.b16 %v290
        %v442 = vunpack.c.h.b16 %v290
        %v443 = vunpack.c.l.b16 %v291
        %v444 = vunpack.c.h.b16 %v291
        %v445 = vunpack.c.l.b16 %v292
        %v446 = vunpack.c.h.b16 %v292
        %v447 = vunpack.c.l.b16 %v293
        %v448 = vunpack.c.h.b16 %v293
        %v449 = vunpack.c.l.b16 %v294
        %v450 = vunpack.c.h.b16 %v294
        %v451 = vpack.c.b16 %v421, %v419
        %v452 = vpack.c.b16 %v422, %v420
        %v453 = vpack.c.b16 %v425, %v423
        %v454 = vpack.c.b16 %v426, %v424
        %v455 = vpack.c.b16 %v429, %v427
        %v456 = vpack.c.b16 %v430, %v428
        %v457 = vpack.c.b16 %v433, %v431
        %v458 = vpack.c.b16 %v434, %v432
        %v459 = vpack.c.b16 %v437, %v435
        %v460 = vpack.c.b16 %v438, %v436
        %v461 = vpack.c.b16 %v441, %v439
        %v462 = vpack.c.b16 %v442, %v440
        %v463 = vpack.c.b16 %v445, %v443
        %v464 = vpack.c.b16 %v446, %v444
        %v465 = vpack.c.b16 %v449, %v447
        %v466 = vpack.c.b16 %v450, %v448
        %483 = vmatprep.subr.bf16.mxu0 %v452
        %484 = vmatpush1.bf16.msra.mxu0 %v451
        %485 = vmatprep.subr.bf16.mxu0 %v454
        %486 = vmatpush1.bf16.msra.mxu0 %v453
        %487 = vmatprep.subr.bf16.mxu0 %v456
        %488 = vmatpush1.bf16.msra.mxu0 %v455
        %489 = vmatprep.subr.bf16.mxu0 %v458
        %490 = vmatpush1.bf16.msra.mxu0 %v457
        %491 = vmatprep.subr.bf16.mxu0 %v460
        %492 = vmatpush1.bf16.msra.mxu0 %v459
        %493 = vmatprep.subr.bf16.mxu0 %v462
        %494 = vmatpush1.bf16.msra.mxu0 %v461
        %495 = vmatprep.subr.bf16.mxu0 %v464
        %496 = vmatpush1.bf16.msra.mxu0 %v463
        %497 = vmatprep.subr.bf16.mxu0 %v466
        %498 = vmatpush1.bf16.msra.mxu0 %v465
        %499 = vmatprep.subr.bf16.mxu0 0
        %500 = vmatpush1.bf16.msra.mxu0 0
        %501 = vmatprep.subr.bf16.mxu0 0
        %502 = vmatpush1.bf16.msra.mxu0 0
        %503 = vmatprep.subr.bf16.mxu0 0
        %504 = vmatpush1.bf16.msra.mxu0 0
        %505 = vmatprep.subr.bf16.mxu0 0
        %506 = vmatpush1.bf16.msra.mxu0 0
        %507 = vmatprep.subr.bf16.mxu0 0
        %508 = vmatpush1.bf16.msra.mxu0 0
        %509 = vmatprep.subr.bf16.mxu0 0
        %510 = vmatpush1.bf16.msra.mxu0 0
        %511 = vmatprep.subr.bf16.mxu0 0
        %512 = vmatpush1.bf16.msra.mxu0 0
        %513 = vmatprep.subr.bf16.mxu0 0
        %514 = vmatpush1.bf16.msra.mxu0 0
        %515 = vmatprep.mubr.bf16.mxu0 0
        %516 = vmatmul.mubr.bf16.gmra.mrb[0].mxu0 %v371
        %v517 = vpop.f32.mrb[0].mxu0
        %v518 = vadd.f32 %v300, %v517
        %v519 = vpop.f32.mrb[0].mxu0
        %v520 = vadd.f32 %v304, %v519
        %v521 = vpop.f32.mrb[0].mxu0
        %v522 = vadd.f32 %v300, %v521
        %v523 = vpop.f32.mrb[0].mxu0
        %v524 = vadd.f32 %v304, %v523
        %525 = vmatprep.mubr.bf16.mxu0 0
        %526 = vmatmul.mubr.bf16.gmra.mrb[0].mxu0 %v372
        %v527 = vpop.f32.mrb[0].mxu0
        %v528 = vadd.f32 %v300, %v527
        %v529 = vpop.f32.mrb[0].mxu0
        %v530 = vadd.f32 %v304, %v529
        %v531 = vpop.f32.mrb[0].mxu0
        %v532 = vadd.f32 %v300, %v531
        %v533 = vpop.f32.mrb[0].mxu0
        %v534 = vadd.f32 %v304, %v533
        %535 = vmatprep.mubr.bf16.mxu0 0
        %536 = vmatmul.mubr.bf16.gmra.mrb[0].mxu0 %v373
        %v537 = vpop.f32.mrb[0].mxu0
        %v538 = vadd.f32 %v300, %v537
        %v539 = vpop.f32.mrb[0].mxu0
        %v540 = vadd.f32 %v304, %v539
        %v541 = vpop.f32.mrb[0].mxu0
        %v542 = vadd.f32 %v300, %v541
        %v543 = vpop.f32.mrb[0].mxu0
        %v544 = vadd.f32 %v304, %v543
        %545 = vmatprep.mubr.bf16.mxu0 0
        %546 = vmatmul.mubr.bf16.gmra.mrb[0].mxu0 %v374
        %v547 = vpop.f32.mrb[0].mxu0
        %v548 = vadd.f32 %v300, %v547
        %v549 = vpop.f32.mrb[0].mxu0
        %v550 = vadd.f32 %v304, %v549
        %v551 = vpop.f32.mrb[0].mxu0
        %v552 = vadd.f32 %v300, %v551
        %v553 = vpop.f32.mrb[0].mxu0
        %v554 = vadd.f32 %v304, %v553
        %555 = vmatprep.mubr.bf16.mxu0 0
        %556 = vmatmul.mubr.bf16.gmra.mrb[0].mxu0 %v375
        %v557 = vpop.f32.mrb[0].mxu0
        %v558 = vadd.f32 %v300, %v557
        %v559 = vpop.f32.mrb[0].mxu0
        %v560 = vadd.f32 %v304, %v559
        %v561 = vpop.f32.mrb[0].mxu0
        %v562 = vadd.f32 %v300, %v561
        %v563 = vpop.f32.mrb[0].mxu0
        %v564 = vadd.f32 %v304, %v563
        %565 = vmatprep.mubr.bf16.mxu0 0
        %566 = vmatmul.mubr.bf16.gmra.mrb[0].mxu0 %v376
        %v567 = vpop.f32.mrb[0].mxu0
        %v568 = vadd.f32 %v300, %v567
        %v569 = vpop.f32.mrb[0].mxu0
        %v570 = vadd.f32 %v304, %v569
        %v571 = vpop.f32.mrb[0].mxu0
        %v572 = vadd.f32 %v300, %v571
        %v573 = vpop.f32.mrb[0].mxu0
        %v574 = vadd.f32 %v304, %v573
        %575 = vmatprep.mubr.bf16.mxu0 0
        %576 = vmatmul.mubr.bf16.gmra.mrb[0].mxu0 %v377
        %v577 = vpop.f32.mrb[0].mxu0
        %v578 = vadd.f32 %v300, %v577
        %v579 = vpop.f32.mrb[0].mxu0
        %v580 = vadd.f32 %v304, %v579
        %v581 = vpop.f32.mrb[0].mxu0
        %v582 = vadd.f32 %v300, %v581
        %v583 = vpop.f32.mrb[0].mxu0
        %v584 = vadd.f32 %v304, %v583
        %585 = vmatprep.mubr.bf16.mxu0 0
        %586 = vmatmul.mubr.bf16.gmra.mrb[0].mxu0 %v378
        %v587 = vpop.f32.mrb[0].mxu0
        %v588 = vadd.f32 %v300, %v587
        %v589 = vpop.f32.mrb[0].mxu0
        %v590 = vadd.f32 %v304, %v589
        %v591 = vpop.f32.mrb[0].mxu0
        %v592 = vadd.f32 %v300, %v591
        %v593 = vpop.f32.mrb[0].mxu0
        %v594 = vadd.f32 %v304, %v593
        %595 = vmatprep.mubr.bf16.mxu0 0
        %596 = vmatmul.mubr.bf16.gmra.mrb[0].mxu0 %v379
        %v597 = vpop.f32.mrb[0].mxu0
        %v598 = vadd.f32 %v300, %v597
        %v599 = vpop.f32.mrb[0].mxu0
        %v600 = vadd.f32 %v304, %v599
        %v601 = vpop.f32.mrb[0].mxu0
        %v602 = vadd.f32 %v300, %v601
        %v603 = vpop.f32.mrb[0].mxu0
        %v604 = vadd.f32 %v304, %v603
        %605 = vmatprep.mubr.bf16.mxu0 0
        %606 = vmatmul.mubr.bf16.gmra.mrb[0].mxu0 %v380
        %v607 = vpop.f32.mrb[0].mxu0
        %v608 = vadd.f32 %v300, %v607
        %v609 = vpop.f32.mrb[0].mxu0
        %v610 = vadd.f32 %v304, %v609
        %v611 = vpop.f32.mrb[0].mxu0
        %v612 = vadd.f32 %v300, %v611
        %v613 = vpop.f32.mrb[0].mxu0
        %v614 = vadd.f32 %v304, %v613
        %615 = vmatprep.mubr.bf16.mxu0 0
        %616 = vmatmul.mubr.bf16.gmra.mrb[0].mxu0 %v381
        %v617 = vpop.f32.mrb[0].mxu0
        %v618 = vadd.f32 %v300, %v617
        %v619 = vpop.f32.mrb[0].mxu0
        %v620 = vadd.f32 %v304, %v619
        %v621 = vpop.f32.mrb[0].mxu0
        %v622 = vadd.f32 %v300, %v621
        %v623 = vpop.f32.mrb[0].mxu0
        %v624 = vadd.f32 %v304, %v623
        %625 = vmatprep.mubr.bf16.mxu0 0
        %626 = vmatmul.mubr.bf16.gmra.mrb[0].mxu0 %v382
        %v627 = vpop.f32.mrb[0].mxu0
        %v628 = vadd.f32 %v300, %v627
        %v629 = vpop.f32.mrb[0].mxu0
        %v630 = vadd.f32 %v304, %v629
        %v631 = vpop.f32.mrb[0].mxu0
        %v632 = vadd.f32 %v300, %v631
        %v633 = vpop.f32.mrb[0].mxu0
        %v634 = vadd.f32 %v304, %v633
        %635 = vmatprep.mubr.bf16.mxu0 0
        %636 = vmatmul.mubr.bf16.gmra.mrb[0].mxu0 %v383
        %v637 = vpop.f32.mrb[0].mxu0
        %v638 = vadd.f32 %v300, %v637
        %v639 = vpop.f32.mrb[0].mxu0
        %v640 = vadd.f32 %v304, %v639
        %v641 = vpop.f32.mrb[0].mxu0
        %v642 = vadd.f32 %v300, %v641
        %v643 = vpop.f32.mrb[0].mxu0
        %v644 = vadd.f32 %v304, %v643
        %645 = vmatprep.mubr.bf16.mxu0 0
        %646 = vmatmul.mubr.bf16.gmra.mrb[0].mxu0 %v384
        %v647 = vpop.f32.mrb[0].mxu0
        %v648 = vadd.f32 %v300, %v647
        %v649 = vpop.f32.mrb[0].mxu0
        %v650 = vadd.f32 %v304, %v649
        %v651 = vpop.f32.mrb[0].mxu0
        %v652 = vadd.f32 %v300, %v651
        %v653 = vpop.f32.mrb[0].mxu0
        %v654 = vadd.f32 %v304, %v653
        %655 = vmatprep.mubr.bf16.mxu0 0
        %656 = vmatmul.mubr.bf16.gmra.mrb[0].mxu0 %v385
        %v657 = vpop.f32.mrb[0].mxu0
        %v658 = vadd.f32 %v300, %v657
        %v659 = vpop.f32.mrb[0].mxu0
        %v660 = vadd.f32 %v304, %v659
        %v661 = vpop.f32.mrb[0].mxu0
        %v662 = vadd.f32 %v300, %v661
        %v663 = vpop.f32.mrb[0].mxu0
        %v664 = vadd.f32 %v304, %v663
        %665 = vmatprep.mubr.bf16.mxu0 0
        %666 = vmatmul.mubr.bf16.gmra.mrb[0].mxu0 %v386
        %v667 = vpop.f32.mrb[0].mxu0
        %v668 = vadd.f32 %v300, %v667
        %v669 = vpop.f32.mrb[0].mxu0
        %v670 = vadd.f32 %v304, %v669
        %v671 = vpop.f32.mrb[0].mxu0
        %v672 = vadd.f32 %v300, %v671
        %v673 = vpop.f32.mrb[0].mxu0
        %v674 = vadd.f32 %v304, %v673
        %675 = vdwg.mxu0
        %v676 = vmax.f32 %v518, 0.0
        %v677 = vmax.f32 %v520, 0.0
        %v678 = vmax.f32 %v522, 0.0
        %v679 = vmax.f32 %v524, 0.0
        %v680 = vmax.f32 %v528, 0.0
        %v681 = vmax.f32 %v530, 0.0
        %v682 = vmax.f32 %v532, 0.0
        %v683 = vmax.f32 %v534, 0.0
        %v684 = vmax.f32 %v538, 0.0
        %v685 = vmax.f32 %v540, 0.0
        %v686 = vmax.f32 %v542, 0.0
        %v687 = vmax.f32 %v544, 0.0
        %v688 = vmax.f32 %v548, 0.0
        %v689 = vmax.f32 %v550, 0.0
        %v690 = vmax.f32 %v552, 0.0
        %v691 = vmax.f32 %v554, 0.0
        %v692 = vmax.f32 %v558, 0.0
        %v693 = vmax.f32 %v560, 0.0
        %v694 = vmax.f32 %v562, 0.0
        %v695 = vmax.f32 %v564, 0.0
        %v696 = vmax.f32 %v568, 0.0
        %v697 = vmax.f32 %v570, 0.0
        %v698 = vmax.f32 %v572, 0.0
        %v699 = vmax.f32 %v574, 0.0
        %v700 = vmax.f32 %v578, 0.0
        %v701 = vmax.f32 %v580, 0.0
        %v702 = vmax.f32 %v582, 0.0
        %v703 = vmax.f32 %v584, 0.0
        %v704 = vmax.f32 %v588, 0.0
        %v705 = vmax.f32 %v590, 0.0
        %v706 = vmax.f32 %v592, 0.0
        %v707 = vmax.f32 %v594, 0.0
        %v708 = vmax.f32 %v598, 0.0
        %v709 = vmax.f32 %v600, 0.0
        %v710 = vmax.f32 %v602, 0.0
        %v711 = vmax.f32 %v604, 0.0
        %v712 = vmax.f32 %v608, 0.0
        %v713 = vmax.f32 %v610, 0.0
        %v714 = vmax.f32 %v612, 0.0
        %v715 = vmax.f32 %v614, 0.0
        %v716 = vmax.f32 %v618, 0.0
        %v717 = vmax.f32 %v620, 0.0
        %v718 = vmax.f32 %v622, 0.0
        %v719 = vmax.f32 %v624, 0.0
        %v720 = vmax.f32 %v628, 0.0
        %v721 = vmax.f32 %v630, 0.0
        %v722 = vmax.f32 %v632, 0.0
        %v723 = vmax.f32 %v634, 0.0
        %v724 = vmax.f32 %v638, 0.0
        %v725 = vmax.f32 %v640, 0.0
        %v726 = vmax.f32 %v642, 0.0
        %v727 = vmax.f32 %v644, 0.0
        %v728 = vmax.f32 %v648, 0.0
        %v729 = vmax.f32 %v650, 0.0
        %v730 = vmax.f32 %v652, 0.0
        %v731 = vmax.f32 %v654, 0.0
        %v732 = vmax.f32 %v658, 0.0
        %v733 = vmax.f32 %v660, 0.0
        %v734 = vmax.f32 %v662, 0.0
        %v735 = vmax.f32 %v664, 0.0
        %v736 = vmax.f32 %v668, 0.0
        %v737 = vmax.f32 %v670, 0.0
        %v738 = vmax.f32 %v672, 0.0
        %v739 = vmax.f32 %v674, 0.0
        %v740 = vpack.c.bf16 %v678, %v676
        %v741 = vpack.c.bf16 %v679, %v677
        %v742 = vpack.c.bf16 %v682, %v680
        %v743 = vpack.c.bf16 %v683, %v681
        %v744 = vpack.c.bf16 %v686, %v684
        %v745 = vpack.c.bf16 %v687, %v685
        %v746 = vpack.c.bf16 %v690, %v688
        %v747 = vpack.c.bf16 %v691, %v689
        %v748 = vpack.c.bf16 %v694, %v692
        %v749 = vpack.c.bf16 %v695, %v693
        %v750 = vpack.c.bf16 %v698, %v696
        %v751 = vpack.c.bf16 %v699, %v697
        %v752 = vpack.c.bf16 %v702, %v700
        %v753 = vpack.c.bf16 %v703, %v701
        %v754 = vpack.c.bf16 %v706, %v704
        %v755 = vpack.c.bf16 %v707, %v705
        %v756 = vpack.c.bf16 %v710, %v708
        %v757 = vpack.c.bf16 %v711, %v709
        %v758 = vpack.c.bf16 %v714, %v712
        %v759 = vpack.c.bf16 %v715, %v713
        %v760 = vpack.c.bf16 %v718, %v716
        %v761 = vpack.c.bf16 %v719, %v717
        %v762 = vpack.c.bf16 %v722, %v720
        %v763 = vpack.c.bf16 %v723, %v721
        %v764 = vpack.c.bf16 %v726, %v724
        %v765 = vpack.c.bf16 %v727, %v725
        %v766 = vpack.c.bf16 %v730, %v728
        %v767 = vpack.c.bf16 %v731, %v729
        %v768 = vpack.c.bf16 %v734, %v732
        %v769 = vpack.c.bf16 %v735, %v733
        %v770 = vpack.c.bf16 %v738, %v736
        %v771 = vpack.c.bf16 %v739, %v737
        %v772 = vld [vmem:[#allocation6 + $0x80] sm:$0xff]
        %v773 = vld [vmem:[#allocation6 + $0x88] sm:$0xff]
        %v774 = vld [vmem:[#allocation6 + $0x90] sm:$0xff]
        %v775 = vld [vmem:[#allocation6 + $0x98] sm:$0xff]
        %v776 = vld [vmem:[#allocation6 + $0xa0] sm:$0xff]
        %v777 = vld [vmem:[#allocation6 + $0xa8] sm:$0xff]
        %v778 = vld [vmem:[#allocation6 + $0xb0] sm:$0xff]
        %v779 = vld [vmem:[#allocation6 + $0xb8] sm:$0xff]
        %v780 = vld [vmem:[#allocation6 + $0xc0] sm:$0xff]
        %v781 = vld [vmem:[#allocation6 + $0xc8] sm:$0xff]
        %v782 = vld [vmem:[#allocation6 + $0xd0] sm:$0xff]
        %v783 = vld [vmem:[#allocation6 + $0xd8] sm:$0xff]
        %v784 = vld [vmem:[#allocation6 + $0xe0] sm:$0xff]
        %v785 = vld [vmem:[#allocation6 + $0xe8] sm:$0xff]
        %v786 = vld [vmem:[#allocation6 + $0xf0] sm:$0xff]
        %v787 = vld [vmem:[#allocation6 + $0xf8] sm:$0xff]
        %v788 = vld [vmem:[#allocation6 + $0x100] sm:$0xff]
        %v789 = vld [vmem:[#allocation6 + $0x108] sm:$0xff]
        %v790 = vld [vmem:[#allocation6 + $0x110] sm:$0xff]
        %v791 = vld [vmem:[#allocation6 + $0x118] sm:$0xff]
        %v792 = vld [vmem:[#allocation6 + $0x120] sm:$0xff]
        %v793 = vld [vmem:[#allocation6 + $0x128] sm:$0xff]
        %v794 = vld [vmem:[#allocation6 + $0x130] sm:$0xff]
        %v795 = vld [vmem:[#allocation6 + $0x138] sm:$0xff]
        %v796 = vld [vmem:[#allocation6 + $0x140] sm:$0xff]
        %v797 = vld [vmem:[#allocation6 + $0x148] sm:$0xff]
        %v798 = vld [vmem:[#allocation6 + $0x150] sm:$0xff]
        %v799 = vld [vmem:[#allocation6 + $0x158] sm:$0xff]
        %v800 = vld [vmem:[#allocation6 + $0x160] sm:$0xff]
        %v801 = vld [vmem:[#allocation6 + $0x168] sm:$0xff]
        %v802 = vld [vmem:[#allocation6 + $0x170] sm:$0xff]
        %v803 = vld [vmem:[#allocation6 + $0x178] sm:$0xff]
        %s804 = scalar_lea.vmem [#allocation8], 1
        %v805 = vld [vmem:[%s804] ss:$8 sm:$0x3]
        %v807 = vlaneseq
        %v808 = vshrl.u32 %v807, 7
        %v809 = vsub.s32 0, %v808
        %v810 = vrot.slane %v805, %v809
        %v811 = vlaneseq
        %v812 = vshrl.u32 %v811, 7
        %v813 = vsub.s32 1, %v812
        %v814 = vrot.slane %v805, %v813
        %v849 = vunpack.c.l.b16 %v772
        %v850 = vunpack.c.h.b16 %v772
        %v851 = vunpack.c.l.b16 %v773
        %v852 = vunpack.c.h.b16 %v773
        %v853 = vunpack.c.l.b16 %v774
        %v854 = vunpack.c.h.b16 %v774
        %v855 = vunpack.c.l.b16 %v775
        %v856 = vunpack.c.h.b16 %v775
        %v857 = vunpack.c.l.b16 %v776
        %v858 = vunpack.c.h.b16 %v776
        %v859 = vunpack.c.l.b16 %v777
        %v860 = vunpack.c.h.b16 %v777
        %v861 = vunpack.c.l.b16 %v778
        %v862 = vunpack.c.h.b16 %v778
        %v863 = vunpack.c.l.b16 %v779
        %v864 = vunpack.c.h.b16 %v779
        %v865 = vunpack.c.l.b16 %v780
        %v866 = vunpack.c.h.b16 %v780
        %v867 = vunpack.c.l.b16 %v781
        %v868 = vunpack.c.h.b16 %v781
        %v869 = vunpack.c.l.b16 %v782
        %v870 = vunpack.c.h.b16 %v782
        %v871 = vunpack.c.l.b16 %v783
        %v872 = vunpack.c.h.b16 %v783
        %v873 = vunpack.c.l.b16 %v784
        %v874 = vunpack.c.h.b16 %v784
        %v875 = vunpack.c.l.b16 %v785
        %v876 = vunpack.c.h.b16 %v785
        %v877 = vunpack.c.l.b16 %v786
        %v878 = vunpack.c.h.b16 %v786
        %v879 = vunpack.c.l.b16 %v787
        %v880 = vunpack.c.h.b16 %v787
        %v881 = vunpack.c.l.b16 %v788
        %v882 = vunpack.c.h.b16 %v788
        %v883 = vunpack.c.l.b16 %v789
        %v884 = vunpack.c.h.b16 %v789
        %v885 = vunpack.c.l.b16 %v790
        %v886 = vunpack.c.h.b16 %v790
        %v887 = vunpack.c.l.b16 %v791
        %v888 = vunpack.c.h.b16 %v791
        %v889 = vunpack.c.l.b16 %v792
        %v890 = vunpack.c.h.b16 %v792
        %v891 = vunpack.c.l.b16 %v793
        %v892 = vunpack.c.h.b16 %v793
        %v893 = vunpack.c.l.b16 %v794
        %v894 = vunpack.c.h.b16 %v794
        %v895 = vunpack.c.l.b16 %v795
        %v896 = vunpack.c.h.b16 %v795
        %v897 = vunpack.c.l.b16 %v796
        %v898 = vunpack.c.h.b16 %v796
        %v899 = vunpack.c.l.b16 %v797
        %v900 = vunpack.c.h.b16 %v797
        %v901 = vunpack.c.l.b16 %v798
        %v902 = vunpack.c.h.b16 %v798
        %v903 = vunpack.c.l.b16 %v799
        %v904 = vunpack.c.h.b16 %v799
        %v905 = vunpack.c.l.b16 %v800
        %v906 = vunpack.c.h.b16 %v800
        %v907 = vunpack.c.l.b16 %v801
        %v908 = vunpack.c.h.b16 %v801
        %v909 = vunpack.c.l.b16 %v802
        %v910 = vunpack.c.h.b16 %v802
        %v911 = vunpack.c.l.b16 %v803
        %v912 = vunpack.c.h.b16 %v803
        %v913 = vpack.c.b16 %v851, %v849
        %v914 = vpack.c.b16 %v852, %v850
        %v915 = vpack.c.b16 %v855, %v853
        %v916 = vpack.c.b16 %v856, %v854
        %v917 = vpack.c.b16 %v859, %v857
        %v918 = vpack.c.b16 %v860, %v858
        %v919 = vpack.c.b16 %v863, %v861
        %v920 = vpack.c.b16 %v864, %v862
        %v921 = vpack.c.b16 %v867, %v865
        %v922 = vpack.c.b16 %v868, %v866
        %v923 = vpack.c.b16 %v871, %v869
        %v924 = vpack.c.b16 %v872, %v870
        %v925 = vpack.c.b16 %v875, %v873
        %v926 = vpack.c.b16 %v876, %v874
        %v927 = vpack.c.b16 %v879, %v877
        %v928 = vpack.c.b16 %v880, %v878
        %v929 = vpack.c.b16 %v883, %v881
        %v930 = vpack.c.b16 %v884, %v882
        %v931 = vpack.c.b16 %v887, %v885
        %v932 = vpack.c.b16 %v888, %v886
        %v933 = vpack.c.b16 %v891, %v889
        %v934 = vpack.c.b16 %v892, %v890
        %v935 = vpack.c.b16 %v895, %v893
        %v936 = vpack.c.b16 %v896, %v894
        %v937 = vpack.c.b16 %v899, %v897
        %v938 = vpack.c.b16 %v900, %v898
        %v939 = vpack.c.b16 %v903, %v901
        %v940 = vpack.c.b16 %v904, %v902
        %v941 = vpack.c.b16 %v907, %v905
        %v942 = vpack.c.b16 %v908, %v906
        %v943 = vpack.c.b16 %v911, %v909
        %v944 = vpack.c.b16 %v912, %v910
        %977 = vmatprep.subr.bf16.mxu0 %v914
        %978 = vmatpush1.bf16.msra.mxu0 %v913
        %979 = vmatprep.subr.bf16.mxu0 %v916
        %980 = vmatpush1.bf16.msra.mxu0 %v915
        %981 = vmatprep.subr.bf16.mxu0 %v918
        %982 = vmatpush1.bf16.msra.mxu0 %v917
        %983 = vmatprep.subr.bf16.mxu0 %v920
        %984 = vmatpush1.bf16.msra.mxu0 %v919
        %985 = vmatprep.subr.bf16.mxu0 %v922
        %986 = vmatpush1.bf16.msra.mxu0 %v921
        %987 = vmatprep.subr.bf16.mxu0 %v924
        %988 = vmatpush1.bf16.msra.mxu0 %v923
        %989 = vmatprep.subr.bf16.mxu0 %v926
        %990 = vmatpush1.bf16.msra.mxu0 %v925
        %991 = vmatprep.subr.bf16.mxu0 %v928
        %992 = vmatpush1.bf16.msra.mxu0 %v927
        %993 = vmatprep.subr.bf16.mxu0 %v930
        %994 = vmatpush1.bf16.msra.mxu0 %v929
        %995 = vmatprep.subr.bf16.mxu0 %v932
        %996 = vmatpush1.bf16.msra.mxu0 %v931
        %997 = vmatprep.subr.bf16.mxu0 %v934
        %998 = vmatpush1.bf16.msra.mxu0 %v933
        %999 = vmatprep.subr.bf16.mxu0 %v936
        %1000 = vmatpush1.bf16.msra.mxu0 %v935
        %1001 = vmatprep.subr.bf16.mxu0 %v938
        %1002 = vmatpush1.bf16.msra.mxu0 %v937
        %1003 = vmatprep.subr.bf16.mxu0 %v940
        %1004 = vmatpush1.bf16.msra.mxu0 %v939
        %1005 = vmatprep.subr.bf16.mxu0 %v942
        %1006 = vmatpush1.bf16.msra.mxu0 %v941
        %1007 = vmatprep.subr.bf16.mxu0 %v944
        %1008 = vmatpush1.bf16.msra.mxu0 %v943
        %1009 = vmatprep.mubr.bf16.mxu0 %v741
        %1010 = vmatmul.mubr.bf16.gmra.mrb[0].mxu0 %v740
        %v1011 = vpop.f32.mrb[0].mxu0
        %v1012 = vadd.f32 %v810, %v1011
        %v1013 = vpop.f32.mrb[0].mxu0
        %v1014 = vadd.f32 %v814, %v1013
        %v1015 = vpop.f32.mrb[0].mxu0
        %v1016 = vadd.f32 %v810, %v1015
        %v1017 = vpop.f32.mrb[0].mxu0
        %v1018 = vadd.f32 %v814, %v1017
        %1019 = vmatprep.mubr.bf16.mxu0 %v743
        %1020 = vmatmul.mubr.bf16.gmra.mrb[0].mxu0 %v742
        %v1021 = vpop.f32.mrb[0].mxu0
        %v1022 = vadd.f32 %v810, %v1021
        %v1023 = vpop.f32.mrb[0].mxu0
        %v1024 = vadd.f32 %v814, %v1023
        %v1025 = vpop.f32.mrb[0].mxu0
        %v1026 = vadd.f32 %v810, %v1025
        %v1027 = vpop.f32.mrb[0].mxu0
        %v1028 = vadd.f32 %v814, %v1027
        %1029 = vmatprep.mubr.bf16.mxu0 %v745
        %1030 = vmatmul.mubr.bf16.gmra.mrb[0].mxu0 %v744
        %v1031 = vpop.f32.mrb[0].mxu0
        %v1032 = vadd.f32 %v810, %v1031
        %v1033 = vpop.f32.mrb[0].mxu0
        %v1034 = vadd.f32 %v814, %v1033
        %v1035 = vpop.f32.mrb[0].mxu0
        %v1036 = vadd.f32 %v810, %v1035
        %v1037 = vpop.f32.mrb[0].mxu0
        %v1038 = vadd.f32 %v814, %v1037
        %1039 = vmatprep.mubr.bf16.mxu0 %v747
        %1040 = vmatmul.mubr.bf16.gmra.mrb[0].mxu0 %v746
        %v1041 = vpop.f32.mrb[0].mxu0
        %v1042 = vadd.f32 %v810, %v1041
        %v1043 = vpop.f32.mrb[0].mxu0
        %v1044 = vadd.f32 %v814, %v1043
        %v1045 = vpop.f32.mrb[0].mxu0
        %v1046 = vadd.f32 %v810, %v1045
        %v1047 = vpop.f32.mrb[0].mxu0
        %v1048 = vadd.f32 %v814, %v1047
        %1049 = vmatprep.mubr.bf16.mxu0 %v749
        %1050 = vmatmul.mubr.bf16.gmra.mrb[0].mxu0 %v748
        %v1051 = vpop.f32.mrb[0].mxu0
        %v1052 = vadd.f32 %v810, %v1051
        %v1053 = vpop.f32.mrb[0].mxu0
        %v1054 = vadd.f32 %v814, %v1053
        %v1055 = vpop.f32.mrb[0].mxu0
        %v1056 = vadd.f32 %v810, %v1055
        %v1057 = vpop.f32.mrb[0].mxu0
        %v1058 = vadd.f32 %v814, %v1057
        %1059 = vmatprep.mubr.bf16.mxu0 %v751
        %1060 = vmatmul.mubr.bf16.gmra.mrb[0].mxu0 %v750
        %v1061 = vpop.f32.mrb[0].mxu0
        %v1062 = vadd.f32 %v810, %v1061
        %v1063 = vpop.f32.mrb[0].mxu0
        %v1064 = vadd.f32 %v814, %v1063
        %v1065 = vpop.f32.mrb[0].mxu0
        %v1066 = vadd.f32 %v810, %v1065
        %v1067 = vpop.f32.mrb[0].mxu0
        %v1068 = vadd.f32 %v814, %v1067
        %1069 = vmatprep.mubr.bf16.mxu0 %v753
        %1070 = vmatmul.mubr.bf16.gmra.mrb[0].mxu0 %v752
        %v1071 = vpop.f32.mrb[0].mxu0
        %v1072 = vadd.f32 %v810, %v1071
        %v1073 = vpop.f32.mrb[0].mxu0
        %v1074 = vadd.f32 %v814, %v1073
        %v1075 = vpop.f32.mrb[0].mxu0
        %v1076 = vadd.f32 %v810, %v1075
        %v1077 = vpop.f32.mrb[0].mxu0
        %v1078 = vadd.f32 %v814, %v1077
        %1079 = vmatprep.mubr.bf16.mxu0 %v755
        %1080 = vmatmul.mubr.bf16.gmra.mrb[0].mxu0 %v754
        %v1081 = vpop.f32.mrb[0].mxu0
        %v1082 = vadd.f32 %v810, %v1081
        %v1083 = vpop.f32.mrb[0].mxu0
        %v1084 = vadd.f32 %v814, %v1083
        %v1085 = vpop.f32.mrb[0].mxu0
        %v1086 = vadd.f32 %v810, %v1085
        %v1087 = vpop.f32.mrb[0].mxu0
        %v1088 = vadd.f32 %v814, %v1087
        %1089 = vmatprep.mubr.bf16.mxu0 %v757
        %1090 = vmatmul.mubr.bf16.gmra.mrb[0].mxu0 %v756
        %v1091 = vpop.f32.mrb[0].mxu0
        %v1092 = vadd.f32 %v810, %v1091
        %v1093 = vpop.f32.mrb[0].mxu0
        %v1094 = vadd.f32 %v814, %v1093
        %v1095 = vpop.f32.mrb[0].mxu0
        %v1096 = vadd.f32 %v810, %v1095
        %v1097 = vpop.f32.mrb[0].mxu0
        %v1098 = vadd.f32 %v814, %v1097
        %1099 = vmatprep.mubr.bf16.mxu0 %v759
        %1100 = vmatmul.mubr.bf16.gmra.mrb[0].mxu0 %v758
        %v1101 = vpop.f32.mrb[0].mxu0
        %v1102 = vadd.f32 %v810, %v1101
        %v1103 = vpop.f32.mrb[0].mxu0
        %v1104 = vadd.f32 %v814, %v1103
        %v1105 = vpop.f32.mrb[0].mxu0
        %v1106 = vadd.f32 %v810, %v1105
        %v1107 = vpop.f32.mrb[0].mxu0
        %v1108 = vadd.f32 %v814, %v1107
        %1109 = vmatprep.mubr.bf16.mxu0 %v761
        %1110 = vmatmul.mubr.bf16.gmra.mrb[0].mxu0 %v760
        %v1111 = vpop.f32.mrb[0].mxu0
        %v1112 = vadd.f32 %v810, %v1111
        %v1113 = vpop.f32.mrb[0].mxu0
        %v1114 = vadd.f32 %v814, %v1113
        %v1115 = vpop.f32.mrb[0].mxu0
        %v1116 = vadd.f32 %v810, %v1115
        %v1117 = vpop.f32.mrb[0].mxu0
        %v1118 = vadd.f32 %v814, %v1117
        %1119 = vmatprep.mubr.bf16.mxu0 %v763
        %1120 = vmatmul.mubr.bf16.gmra.mrb[0].mxu0 %v762
        %v1121 = vpop.f32.mrb[0].mxu0
        %v1122 = vadd.f32 %v810, %v1121
        %v1123 = vpop.f32.mrb[0].mxu0
        %v1124 = vadd.f32 %v814, %v1123
        %v1125 = vpop.f32.mrb[0].mxu0
        %v1126 = vadd.f32 %v810, %v1125
        %v1127 = vpop.f32.mrb[0].mxu0
        %v1128 = vadd.f32 %v814, %v1127
        %1129 = vmatprep.mubr.bf16.mxu0 %v765
        %1130 = vmatmul.mubr.bf16.gmra.mrb[0].mxu0 %v764
        %v1131 = vpop.f32.mrb[0].mxu0
        %v1132 = vadd.f32 %v810, %v1131
        %v1133 = vpop.f32.mrb[0].mxu0
        %v1134 = vadd.f32 %v814, %v1133
        %v1135 = vpop.f32.mrb[0].mxu0
        %v1136 = vadd.f32 %v810, %v1135
        %v1137 = vpop.f32.mrb[0].mxu0
        %v1138 = vadd.f32 %v814, %v1137
        %1139 = vmatprep.mubr.bf16.mxu0 %v767
        %1140 = vmatmul.mubr.bf16.gmra.mrb[0].mxu0 %v766
        %v1141 = vpop.f32.mrb[0].mxu0
        %v1142 = vadd.f32 %v810, %v1141
        %v1143 = vpop.f32.mrb[0].mxu0
        %v1144 = vadd.f32 %v814, %v1143
        %v1145 = vpop.f32.mrb[0].mxu0
        %v1146 = vadd.f32 %v810, %v1145
        %v1147 = vpop.f32.mrb[0].mxu0
        %v1148 = vadd.f32 %v814, %v1147
        %1149 = vmatprep.mubr.bf16.mxu0 %v769
        %1150 = vmatmul.mubr.bf16.gmra.mrb[0].mxu0 %v768
        %v1151 = vpop.f32.mrb[0].mxu0
        %v1152 = vadd.f32 %v810, %v1151
        %v1153 = vpop.f32.mrb[0].mxu0
        %v1154 = vadd.f32 %v814, %v1153
        %v1155 = vpop.f32.mrb[0].mxu0
        %v1156 = vadd.f32 %v810, %v1155
        %v1157 = vpop.f32.mrb[0].mxu0
        %v1158 = vadd.f32 %v814, %v1157
        %1159 = vmatprep.mubr.bf16.mxu0 %v771
        %1160 = vmatmul.mubr.bf16.gmra.mrb[0].mxu0 %v770
        %v1161 = vpop.f32.mrb[0].mxu0
        %v1162 = vadd.f32 %v810, %v1161
        %v1163 = vpop.f32.mrb[0].mxu0
        %v1164 = vadd.f32 %v814, %v1163
        %v1165 = vpop.f32.mrb[0].mxu0
        %v1166 = vadd.f32 %v810, %v1165
        %v1167 = vpop.f32.mrb[0].mxu0
        %v1168 = vadd.f32 %v814, %v1167
        %1169 = vdwg.mxu0
        %v1170 = vmax.f32 %v1012, 0.0
        %v1171 = vmax.f32 %v1014, 0.0
        %v1172 = vmax.f32 %v1016, 0.0
        %v1173 = vmax.f32 %v1018, 0.0
        %v1174 = vmax.f32 %v1022, 0.0
        %v1175 = vmax.f32 %v1024, 0.0
        %v1176 = vmax.f32 %v1026, 0.0
        %v1177 = vmax.f32 %v1028, 0.0
        %v1178 = vmax.f32 %v1032, 0.0
        %v1179 = vmax.f32 %v1034, 0.0
        %v1180 = vmax.f32 %v1036, 0.0
        %v1181 = vmax.f32 %v1038, 0.0
        %v1182 = vmax.f32 %v1042, 0.0
        %v1183 = vmax.f32 %v1044, 0.0
        %v1184 = vmax.f32 %v1046, 0.0
        %v1185 = vmax.f32 %v1048, 0.0
        %v1186 = vmax.f32 %v1052, 0.0
        %v1187 = vmax.f32 %v1054, 0.0
        %v1188 = vmax.f32 %v1056, 0.0
        %v1189 = vmax.f32 %v1058, 0.0
        %v1190 = vmax.f32 %v1062, 0.0
        %v1191 = vmax.f32 %v1064, 0.0
        %v1192 = vmax.f32 %v1066, 0.0
        %v1193 = vmax.f32 %v1068, 0.0
        %v1194 = vmax.f32 %v1072, 0.0
        %v1195 = vmax.f32 %v1074, 0.0
        %v1196 = vmax.f32 %v1076, 0.0
        %v1197 = vmax.f32 %v1078, 0.0
        %v1198 = vmax.f32 %v1082, 0.0
        %v1199 = vmax.f32 %v1084, 0.0
        %v1200 = vmax.f32 %v1086, 0.0
        %v1201 = vmax.f32 %v1088, 0.0
        %v1202 = vmax.f32 %v1092, 0.0
        %v1203 = vmax.f32 %v1094, 0.0
        %v1204 = vmax.f32 %v1096, 0.0
        %v1205 = vmax.f32 %v1098, 0.0
        %v1206 = vmax.f32 %v1102, 0.0
        %v1207 = vmax.f32 %v1104, 0.0
        %v1208 = vmax.f32 %v1106, 0.0
        %v1209 = vmax.f32 %v1108, 0.0
        %v1210 = vmax.f32 %v1112, 0.0
        %v1211 = vmax.f32 %v1114, 0.0
        %v1212 = vmax.f32 %v1116, 0.0
        %v1213 = vmax.f32 %v1118, 0.0
        %v1214 = vmax.f32 %v1122, 0.0
        %v1215 = vmax.f32 %v1124, 0.0
        %v1216 = vmax.f32 %v1126, 0.0
        %v1217 = vmax.f32 %v1128, 0.0
        %v1218 = vmax.f32 %v1132, 0.0
        %v1219 = vmax.f32 %v1134, 0.0
        %v1220 = vmax.f32 %v1136, 0.0
        %v1221 = vmax.f32 %v1138, 0.0
        %v1222 = vmax.f32 %v1142, 0.0
        %v1223 = vmax.f32 %v1144, 0.0
        %v1224 = vmax.f32 %v1146, 0.0
        %v1225 = vmax.f32 %v1148, 0.0
        %v1226 = vmax.f32 %v1152, 0.0
        %v1227 = vmax.f32 %v1154, 0.0
        %v1228 = vmax.f32 %v1156, 0.0
        %v1229 = vmax.f32 %v1158, 0.0
        %v1230 = vmax.f32 %v1162, 0.0
        %v1231 = vmax.f32 %v1164, 0.0
        %v1232 = vmax.f32 %v1166, 0.0
        %v1233 = vmax.f32 %v1168, 0.0
        %v1234 = vpack.c.bf16 %v1172, %v1170
        %v1235 = vpack.c.bf16 %v1173, %v1171
        %v1236 = vpack.c.bf16 %v1176, %v1174
        %v1237 = vpack.c.bf16 %v1177, %v1175
        %v1238 = vpack.c.bf16 %v1180, %v1178
        %v1239 = vpack.c.bf16 %v1181, %v1179
        %v1240 = vpack.c.bf16 %v1184, %v1182
        %v1241 = vpack.c.bf16 %v1185, %v1183
        %v1242 = vpack.c.bf16 %v1188, %v1186
        %v1243 = vpack.c.bf16 %v1189, %v1187
        %v1244 = vpack.c.bf16 %v1192, %v1190
        %v1245 = vpack.c.bf16 %v1193, %v1191
        %v1246 = vpack.c.bf16 %v1196, %v1194
        %v1247 = vpack.c.bf16 %v1197, %v1195
        %v1248 = vpack.c.bf16 %v1200, %v1198
        %v1249 = vpack.c.bf16 %v1201, %v1199
        %v1250 = vpack.c.bf16 %v1204, %v1202
        %v1251 = vpack.c.bf16 %v1205, %v1203
        %v1252 = vpack.c.bf16 %v1208, %v1206
        %v1253 = vpack.c.bf16 %v1209, %v1207
        %v1254 = vpack.c.bf16 %v1212, %v1210
        %v1255 = vpack.c.bf16 %v1213, %v1211
        %v1256 = vpack.c.bf16 %v1216, %v1214
        %v1257 = vpack.c.bf16 %v1217, %v1215
        %v1258 = vpack.c.bf16 %v1220, %v1218
        %v1259 = vpack.c.bf16 %v1221, %v1219
        %v1260 = vpack.c.bf16 %v1224, %v1222
        %v1261 = vpack.c.bf16 %v1225, %v1223
        %v1262 = vpack.c.bf16 %v1228, %v1226
        %v1263 = vpack.c.bf16 %v1229, %v1227
        %v1264 = vpack.c.bf16 %v1232, %v1230
        %v1265 = vpack.c.bf16 %v1233, %v1231
        %v1266 = vld [vmem:[#allocation6 + $0x180] sm:$0xff]
        %v1267 = vld [vmem:[#allocation6 + $0x188] sm:$0xff]
        %v1268 = vld [vmem:[#allocation6 + $0x190] sm:$0xff]
        %v1269 = vld [vmem:[#allocation6 + $0x198] sm:$0xff]
        %v1270 = vld [vmem:[#allocation6 + $0x1a0] sm:$0xff]
        %v1271 = vld [vmem:[#allocation6 + $0x1a8] sm:$0xff]
        %v1272 = vld [vmem:[#allocation6 + $0x1b0] sm:$0xff]
        %v1273 = vld [vmem:[#allocation6 + $0x1b8] sm:$0xff]
        %v1274 = vld [vmem:[#allocation6 + $0x1c0] sm:$0xff]
        %v1275 = vld [vmem:[#allocation6 + $0x1c8] sm:$0xff]
        %v1276 = vld [vmem:[#allocation6 + $0x1d0] sm:$0xff]
        %v1277 = vld [vmem:[#allocation6 + $0x1d8] sm:$0xff]
        %v1278 = vld [vmem:[#allocation6 + $0x1e0] sm:$0xff]
        %v1279 = vld [vmem:[#allocation6 + $0x1e8] sm:$0xff]
        %v1280 = vld [vmem:[#allocation6 + $0x1f0] sm:$0xff]
        %v1281 = vld [vmem:[#allocation6 + $0x1f8] sm:$0xff]
        %v1282 = vld [vmem:[#allocation6 + $0x200] sm:$0xff]
        %v1283 = vld [vmem:[#allocation6 + $0x208] sm:$0xff]
        %v1284 = vld [vmem:[#allocation6 + $0x210] sm:$0xff]
        %v1285 = vld [vmem:[#allocation6 + $0x218] sm:$0xff]
        %v1286 = vld [vmem:[#allocation6 + $0x220] sm:$0xff]
        %v1287 = vld [vmem:[#allocation6 + $0x228] sm:$0xff]
        %v1288 = vld [vmem:[#allocation6 + $0x230] sm:$0xff]
        %v1289 = vld [vmem:[#allocation6 + $0x238] sm:$0xff]
        %v1290 = vld [vmem:[#allocation6 + $0x240] sm:$0xff]
        %v1291 = vld [vmem:[#allocation6 + $0x248] sm:$0xff]
        %v1292 = vld [vmem:[#allocation6 + $0x250] sm:$0xff]
        %v1293 = vld [vmem:[#allocation6 + $0x258] sm:$0xff]
        %v1294 = vld [vmem:[#allocation6 + $0x260] sm:$0xff]
        %v1295 = vld [vmem:[#allocation6 + $0x268] sm:$0xff]
        %v1296 = vld [vmem:[#allocation6 + $0x270] sm:$0xff]
        %v1297 = vld [vmem:[#allocation6 + $0x278] sm:$0xff]
        %s1298 = scalar_lea.vmem [#allocation8], 2
        %v1299 = vld [vmem:[%s1298] ss:$8 sm:$0x3]
        %v1301 = vlaneseq
        %v1302 = vshrl.u32 %v1301, 7
        %v1303 = vsub.s32 0, %v1302
        %v1304 = vrot.slane %v1299, %v1303
        %v1305 = vlaneseq
        %v1306 = vshrl.u32 %v1305, 7
        %v1307 = vsub.s32 1, %v1306
        %v1308 = vrot.slane %v1299, %v1307
        %v1343 = vunpack.c.l.b16 %v1266
        %v1344 = vunpack.c.h.b16 %v1266
        %v1345 = vunpack.c.l.b16 %v1267
        %v1346 = vunpack.c.h.b16 %v1267
        %v1347 = vunpack.c.l.b16 %v1268
        %v1348 = vunpack.c.h.b16 %v1268
        %v1349 = vunpack.c.l.b16 %v1269
        %v1350 = vunpack.c.h.b16 %v1269
        %v1351 = vunpack.c.l.b16 %v1270
        %v1352 = vunpack.c.h.b16 %v1270
        %v1353 = vunpack.c.l.b16 %v1271
        %v1354 = vunpack.c.h.b16 %v1271
        %v1355 = vunpack.c.l.b16 %v1272
        %v1356 = vunpack.c.h.b16 %v1272
        %v1357 = vunpack.c.l.b16 %v1273
        %v1358 = vunpack.c.h.b16 %v1273
        %v1359 = vunpack.c.l.b16 %v1274
        %v1360 = vunpack.c.h.b16 %v1274
        %v1361 = vunpack.c.l.b16 %v1275
        %v1362 = vunpack.c.h.b16 %v1275
        %v1363 = vunpack.c.l.b16 %v1276
        %v1364 = vunpack.c.h.b16 %v1276
        %v1365 = vunpack.c.l.b16 %v1277
        %v1366 = vunpack.c.h.b16 %v1277
        %v1367 = vunpack.c.l.b16 %v1278
        %v1368 = vunpack.c.h.b16 %v1278
        %v1369 = vunpack.c.l.b16 %v1279
        %v1370 = vunpack.c.h.b16 %v1279
        %v1371 = vunpack.c.l.b16 %v1280
        %v1372 = vunpack.c.h.b16 %v1280
        %v1373 = vunpack.c.l.b16 %v1281
        %v1374 = vunpack.c.h.b16 %v1281
        %v1375 = vunpack.c.l.b16 %v1282
        %v1376 = vunpack.c.h.b16 %v1282
        %v1377 = vunpack.c.l.b16 %v1283
        %v1378 = vunpack.c.h.b16 %v1283
        %v1379 = vunpack.c.l.b16 %v1284
        %v1380 = vunpack.c.h.b16 %v1284
        %v1381 = vunpack.c.l.b16 %v1285
        %v1382 = vunpack.c.h.b16 %v1285
        %v1383 = vunpack.c.l.b16 %v1286
        %v1384 = vunpack.c.h.b16 %v1286
        %v1385 = vunpack.c.l.b16 %v1287
        %v1386 = vunpack.c.h.b16 %v1287
        %v1387 = vunpack.c.l.b16 %v1288
        %v1388 = vunpack.c.h.b16 %v1288
        %v1389 = vunpack.c.l.b16 %v1289
        %v1390 = vunpack.c.h.b16 %v1289
        %v1391 = vunpack.c.l.b16 %v1290
        %v1392 = vunpack.c.h.b16 %v1290
        %v1393 = vunpack.c.l.b16 %v1291
        %v1394 = vunpack.c.h.b16 %v1291
        %v1395 = vunpack.c.l.b16 %v1292
        %v1396 = vunpack.c.h.b16 %v1292
        %v1397 = vunpack.c.l.b16 %v1293
        %v1398 = vunpack.c.h.b16 %v1293
        %v1399 = vunpack.c.l.b16 %v1294
        %v1400 = vunpack.c.h.b16 %v1294
        %v1401 = vunpack.c.l.b16 %v1295
        %v1402 = vunpack.c.h.b16 %v1295
        %v1403 = vunpack.c.l.b16 %v1296
        %v1404 = vunpack.c.h.b16 %v1296
        %v1405 = vunpack.c.l.b16 %v1297
        %v1406 = vunpack.c.h.b16 %v1297
        %v1407 = vpack.c.b16 %v1345, %v1343
        %v1408 = vpack.c.b16 %v1346, %v1344
        %v1409 = vpack.c.b16 %v1349, %v1347
        %v1410 = vpack.c.b16 %v1350, %v1348
        %v1411 = vpack.c.b16 %v1353, %v1351
        %v1412 = vpack.c.b16 %v1354, %v1352
        %v1413 = vpack.c.b16 %v1357, %v1355
        %v1414 = vpack.c.b16 %v1358, %v1356
        %v1415 = vpack.c.b16 %v1361, %v1359
        %v1416 = vpack.c.b16 %v1362, %v1360
        %v1417 = vpack.c.b16 %v1365, %v1363
        %v1418 = vpack.c.b16 %v1366, %v1364
        %v1419 = vpack.c.b16 %v1369, %v1367
        %v1420 = vpack.c.b16 %v1370, %v1368
        %v1421 = vpack.c.b16 %v1373, %v1371
        %v1422 = vpack.c.b16 %v1374, %v1372
        %v1423 = vpack.c.b16 %v1377, %v1375
        %v1424 = vpack.c.b16 %v1378, %v1376
        %v1425 = vpack.c.b16 %v1381, %v1379
        %v1426 = vpack.c.b16 %v1382, %v1380
        %v1427 = vpack.c.b16 %v1385, %v1383
        %v1428 = vpack.c.b16 %v1386, %v1384
        %v1429 = vpack.c.b16 %v1389, %v1387
        %v1430 = vpack.c.b16 %v1390, %v1388
        %v1431 = vpack.c.b16 %v1393, %v1391
        %v1432 = vpack.c.b16 %v1394, %v1392
        %v1433 = vpack.c.b16 %v1397, %v1395
        %v1434 = vpack.c.b16 %v1398, %v1396
        %v1435 = vpack.c.b16 %v1401, %v1399
        %v1436 = vpack.c.b16 %v1402, %v1400
        %v1437 = vpack.c.b16 %v1405, %v1403
        %v1438 = vpack.c.b16 %v1406, %v1404
        %1471 = vmatprep.subr.bf16.mxu0 %v1408
        %1472 = vmatpush1.bf16.msra.mxu0 %v1407
        %1473 = vmatprep.subr.bf16.mxu0 %v1410
        %1474 = vmatpush1.bf16.msra.mxu0 %v1409
        %1475 = vmatprep.subr.bf16.mxu0 %v1412
        %1476 = vmatpush1.bf16.msra.mxu0 %v1411
        %1477 = vmatprep.subr.bf16.mxu0 %v1414
        %1478 = vmatpush1.bf16.msra.mxu0 %v1413
        %1479 = vmatprep.subr.bf16.mxu0 %v1416
        %1480 = vmatpush1.bf16.msra.mxu0 %v1415
        %1481 = vmatprep.subr.bf16.mxu0 %v1418
        %1482 = vmatpush1.bf16.msra.mxu0 %v1417
        %1483 = vmatprep.subr.bf16.mxu0 %v1420
        %1484 = vmatpush1.bf16.msra.mxu0 %v1419
        %1485 = vmatprep.subr.bf16.mxu0 %v1422
        %1486 = vmatpush1.bf16.msra.mxu0 %v1421
        %1487 = vmatprep.subr.bf16.mxu0 %v1424
        %1488 = vmatpush1.bf16.msra.mxu0 %v1423
        %1489 = vmatprep.subr.bf16.mxu0 %v1426
        %1490 = vmatpush1.bf16.msra.mxu0 %v1425
        %1491 = vmatprep.subr.bf16.mxu0 %v1428
        %1492 = vmatpush1.bf16.msra.mxu0 %v1427
        %1493 = vmatprep.subr.bf16.mxu0 %v1430
        %1494 = vmatpush1.bf16.msra.mxu0 %v1429
        %1495 = vmatprep.subr.bf16.mxu0 %v1432
        %1496 = vmatpush1.bf16.msra.mxu0 %v1431
        %1497 = vmatprep.subr.bf16.mxu0 %v1434
        %1498 = vmatpush1.bf16.msra.mxu0 %v1433
        %1499 = vmatprep.subr.bf16.mxu0 %v1436
        %1500 = vmatpush1.bf16.msra.mxu0 %v1435
        %1501 = vmatprep.subr.bf16.mxu0 %v1438
        %1502 = vmatpush1.bf16.msra.mxu0 %v1437
        %1503 = vmatprep.mubr.bf16.mxu0 %v1235
        %1504 = vmatmul.mubr.bf16.gmra.mrb[0].mxu0 %v1234
        %v1505 = vpop.f32.mrb[0].mxu0
        %v1506 = vadd.f32 %v1304, %v1505
        %v1507 = vpop.f32.mrb[0].mxu0
        %v1508 = vadd.f32 %v1308, %v1507
        %v1509 = vpop.f32.mrb[0].mxu0
        %v1510 = vadd.f32 %v1304, %v1509
        %v1511 = vpop.f32.mrb[0].mxu0
        %v1512 = vadd.f32 %v1308, %v1511
        %1513 = vmatprep.mubr.bf16.mxu0 %v1237
        %1514 = vmatmul.mubr.bf16.gmra.mrb[0].mxu0 %v1236
        %v1515 = vpop.f32.mrb[0].mxu0
        %v1516 = vadd.f32 %v1304, %v1515
        %v1517 = vpop.f32.mrb[0].mxu0
        %v1518 = vadd.f32 %v1308, %v1517
        %v1519 = vpop.f32.mrb[0].mxu0
        %v1520 = vadd.f32 %v1304, %v1519
        %v1521 = vpop.f32.mrb[0].mxu0
        %v1522 = vadd.f32 %v1308, %v1521
        %1523 = vmatprep.mubr.bf16.mxu0 %v1239
        %1524 = vmatmul.mubr.bf16.gmra.mrb[0].mxu0 %v1238
        %v1525 = vpop.f32.mrb[0].mxu0
        %v1526 = vadd.f32 %v1304, %v1525
        %v1527 = vpop.f32.mrb[0].mxu0
        %v1528 = vadd.f32 %v1308, %v1527
        %v1529 = vpop.f32.mrb[0].mxu0
        %v1530 = vadd.f32 %v1304, %v1529
        %v1531 = vpop.f32.mrb[0].mxu0
        %v1532 = vadd.f32 %v1308, %v1531
        %1533 = vmatprep.mubr.bf16.mxu0 %v1241
        %1534 = vmatmul.mubr.bf16.gmra.mrb[0].mxu0 %v1240
        %v1535 = vpop.f32.mrb[0].mxu0
        %v1536 = vadd.f32 %v1304, %v1535
        %v1537 = vpop.f32.mrb[0].mxu0
        %v1538 = vadd.f32 %v1308, %v1537
        %v1539 = vpop.f32.mrb[0].mxu0
        %v1540 = vadd.f32 %v1304, %v1539
        %v1541 = vpop.f32.mrb[0].mxu0
        %v1542 = vadd.f32 %v1308, %v1541
        %1543 = vmatprep.mubr.bf16.mxu0 %v1243
        %1544 = vmatmul.mubr.bf16.gmra.mrb[0].mxu0 %v1242
        %v1545 = vpop.f32.mrb[0].mxu0
        %v1546 = vadd.f32 %v1304, %v1545
        %v1547 = vpop.f32.mrb[0].mxu0
        %v1548 = vadd.f32 %v1308, %v1547
        %v1549 = vpop.f32.mrb[0].mxu0
        %v1550 = vadd.f32 %v1304, %v1549
        %v1551 = vpop.f32.mrb[0].mxu0
        %v1552 = vadd.f32 %v1308, %v1551
        %1553 = vmatprep.mubr.bf16.mxu0 %v1245
        %1554 = vmatmul.mubr.bf16.gmra.mrb[0].mxu0 %v1244
        %v1555 = vpop.f32.mrb[0].mxu0
        %v1556 = vadd.f32 %v1304, %v1555
        %v1557 = vpop.f32.mrb[0].mxu0
        %v1558 = vadd.f32 %v1308, %v1557
        %v1559 = vpop.f32.mrb[0].mxu0
        %v1560 = vadd.f32 %v1304, %v1559
        %v1561 = vpop.f32.mrb[0].mxu0
        %v1562 = vadd.f32 %v1308, %v1561
        %1563 = vmatprep.mubr.bf16.mxu0 %v1247
        %1564 = vmatmul.mubr.bf16.gmra.mrb[0].mxu0 %v1246
        %v1565 = vpop.f32.mrb[0].mxu0
        %v1566 = vadd.f32 %v1304, %v1565
        %v1567 = vpop.f32.mrb[0].mxu0
        %v1568 = vadd.f32 %v1308, %v1567
        %v1569 = vpop.f32.mrb[0].mxu0
        %v1570 = vadd.f32 %v1304, %v1569
        %v1571 = vpop.f32.mrb[0].mxu0
        %v1572 = vadd.f32 %v1308, %v1571
        %1573 = vmatprep.mubr.bf16.mxu0 %v1249
        %1574 = vmatmul.mubr.bf16.gmra.mrb[0].mxu0 %v1248
        %v1575 = vpop.f32.mrb[0].mxu0
        %v1576 = vadd.f32 %v1304, %v1575
        %v1577 = vpop.f32.mrb[0].mxu0
        %v1578 = vadd.f32 %v1308, %v1577
        %v1579 = vpop.f32.mrb[0].mxu0
        %v1580 = vadd.f32 %v1304, %v1579
        %v1581 = vpop.f32.mrb[0].mxu0
        %v1582 = vadd.f32 %v1308, %v1581
        %1583 = vmatprep.mubr.bf16.mxu0 %v1251
        %1584 = vmatmul.mubr.bf16.gmra.mrb[0].mxu0 %v1250
        %v1585 = vpop.f32.mrb[0].mxu0
        %v1586 = vadd.f32 %v1304, %v1585
        %v1587 = vpop.f32.mrb[0].mxu0
        %v1588 = vadd.f32 %v1308, %v1587
        %v1589 = vpop.f32.mrb[0].mxu0
        %v1590 = vadd.f32 %v1304, %v1589
        %v1591 = vpop.f32.mrb[0].mxu0
        %v1592 = vadd.f32 %v1308, %v1591
        %1593 = vmatprep.mubr.bf16.mxu0 %v1253
        %1594 = vmatmul.mubr.bf16.gmra.mrb[0].mxu0 %v1252
        %v1595 = vpop.f32.mrb[0].mxu0
        %v1596 = vadd.f32 %v1304, %v1595
        %v1597 = vpop.f32.mrb[0].mxu0
        %v1598 = vadd.f32 %v1308, %v1597
        %v1599 = vpop.f32.mrb[0].mxu0
        %v1600 = vadd.f32 %v1304, %v1599
        %v1601 = vpop.f32.mrb[0].mxu0
        %v1602 = vadd.f32 %v1308, %v1601
        %1603 = vmatprep.mubr.bf16.mxu0 %v1255
        %1604 = vmatmul.mubr.bf16.gmra.mrb[0].mxu0 %v1254
        %v1605 = vpop.f32.mrb[0].mxu0
        %v1606 = vadd.f32 %v1304, %v1605
        %v1607 = vpop.f32.mrb[0].mxu0
        %v1608 = vadd.f32 %v1308, %v1607
        %v1609 = vpop.f32.mrb[0].mxu0
        %v1610 = vadd.f32 %v1304, %v1609
        %v1611 = vpop.f32.mrb[0].mxu0
        %v1612 = vadd.f32 %v1308, %v1611
        %1613 = vmatprep.mubr.bf16.mxu0 %v1257
        %1614 = vmatmul.mubr.bf16.gmra.mrb[0].mxu0 %v1256
        %v1615 = vpop.f32.mrb[0].mxu0
        %v1616 = vadd.f32 %v1304, %v1615
        %v1617 = vpop.f32.mrb[0].mxu0
        %v1618 = vadd.f32 %v1308, %v1617
        %v1619 = vpop.f32.mrb[0].mxu0
        %v1620 = vadd.f32 %v1304, %v1619
        %v1621 = vpop.f32.mrb[0].mxu0
        %v1622 = vadd.f32 %v1308, %v1621
        %1623 = vmatprep.mubr.bf16.mxu0 %v1259
        %1624 = vmatmul.mubr.bf16.gmra.mrb[0].mxu0 %v1258
        %v1625 = vpop.f32.mrb[0].mxu0
        %v1626 = vadd.f32 %v1304, %v1625
        %v1627 = vpop.f32.mrb[0].mxu0
        %v1628 = vadd.f32 %v1308, %v1627
        %v1629 = vpop.f32.mrb[0].mxu0
        %v1630 = vadd.f32 %v1304, %v1629
        %v1631 = vpop.f32.mrb[0].mxu0
        %v1632 = vadd.f32 %v1308, %v1631
        %1633 = vmatprep.mubr.bf16.mxu0 %v1261
        %1634 = vmatmul.mubr.bf16.gmra.mrb[0].mxu0 %v1260
        %v1635 = vpop.f32.mrb[0].mxu0
        %v1636 = vadd.f32 %v1304, %v1635
        %v1637 = vpop.f32.mrb[0].mxu0
        %v1638 = vadd.f32 %v1308, %v1637
        %v1639 = vpop.f32.mrb[0].mxu0
        %v1640 = vadd.f32 %v1304, %v1639
        %v1641 = vpop.f32.mrb[0].mxu0
        %v1642 = vadd.f32 %v1308, %v1641
        %1643 = vmatprep.mubr.bf16.mxu0 %v1263
        %1644 = vmatmul.mubr.bf16.gmra.mrb[0].mxu0 %v1262
        %v1645 = vpop.f32.mrb[0].mxu0
        %v1646 = vadd.f32 %v1304, %v1645
        %v1647 = vpop.f32.mrb[0].mxu0
        %v1648 = vadd.f32 %v1308, %v1647
        %v1649 = vpop.f32.mrb[0].mxu0
        %v1650 = vadd.f32 %v1304, %v1649
        %v1651 = vpop.f32.mrb[0].mxu0
        %v1652 = vadd.f32 %v1308, %v1651
        %1653 = vmatprep.mubr.bf16.mxu0 %v1265
        %1654 = vmatmul.mubr.bf16.gmra.mrb[0].mxu0 %v1264
        %v1655 = vpop.f32.mrb[0].mxu0
        %v1656 = vadd.f32 %v1304, %v1655
        %v1657 = vpop.f32.mrb[0].mxu0
        %v1658 = vadd.f32 %v1308, %v1657
        %v1659 = vpop.f32.mrb[0].mxu0
        %v1660 = vadd.f32 %v1304, %v1659
        %v1661 = vpop.f32.mrb[0].mxu0
        %v1662 = vadd.f32 %v1308, %v1661
        %1663 = vdwg.mxu0
        %v1664 = vmax.f32 %v1506, 0.0
        %v1665 = vmax.f32 %v1508, 0.0
        %v1666 = vmax.f32 %v1510, 0.0
        %v1667 = vmax.f32 %v1512, 0.0
        %v1668 = vmax.f32 %v1516, 0.0
        %v1669 = vmax.f32 %v1518, 0.0
        %v1670 = vmax.f32 %v1520, 0.0
        %v1671 = vmax.f32 %v1522, 0.0
        %v1672 = vmax.f32 %v1526, 0.0
        %v1673 = vmax.f32 %v1528, 0.0
        %v1674 = vmax.f32 %v1530, 0.0
        %v1675 = vmax.f32 %v1532, 0.0
        %v1676 = vmax.f32 %v1536, 0.0
        %v1677 = vmax.f32 %v1538, 0.0
        %v1678 = vmax.f32 %v1540, 0.0
        %v1679 = vmax.f32 %v1542, 0.0
        %v1680 = vmax.f32 %v1546, 0.0
        %v1681 = vmax.f32 %v1548, 0.0
        %v1682 = vmax.f32 %v1550, 0.0
        %v1683 = vmax.f32 %v1552, 0.0
        %v1684 = vmax.f32 %v1556, 0.0
        %v1685 = vmax.f32 %v1558, 0.0
        %v1686 = vmax.f32 %v1560, 0.0
        %v1687 = vmax.f32 %v1562, 0.0
        %v1688 = vmax.f32 %v1566, 0.0
        %v1689 = vmax.f32 %v1568, 0.0
        %v1690 = vmax.f32 %v1570, 0.0
        %v1691 = vmax.f32 %v1572, 0.0
        %v1692 = vmax.f32 %v1576, 0.0
        %v1693 = vmax.f32 %v1578, 0.0
        %v1694 = vmax.f32 %v1580, 0.0
        %v1695 = vmax.f32 %v1582, 0.0
        %v1696 = vmax.f32 %v1586, 0.0
        %v1697 = vmax.f32 %v1588, 0.0
        %v1698 = vmax.f32 %v1590, 0.0
        %v1699 = vmax.f32 %v1592, 0.0
        %v1700 = vmax.f32 %v1596, 0.0
        %v1701 = vmax.f32 %v1598, 0.0
        %v1702 = vmax.f32 %v1600, 0.0
        %v1703 = vmax.f32 %v1602, 0.0
        %v1704 = vmax.f32 %v1606, 0.0
        %v1705 = vmax.f32 %v1608, 0.0
        %v1706 = vmax.f32 %v1610, 0.0
        %v1707 = vmax.f32 %v1612, 0.0
        %v1708 = vmax.f32 %v1616, 0.0
        %v1709 = vmax.f32 %v1618, 0.0
        %v1710 = vmax.f32 %v1620, 0.0
        %v1711 = vmax.f32 %v1622, 0.0
        %v1712 = vmax.f32 %v1626, 0.0
        %v1713 = vmax.f32 %v1628, 0.0
        %v1714 = vmax.f32 %v1630, 0.0
        %v1715 = vmax.f32 %v1632, 0.0
        %v1716 = vmax.f32 %v1636, 0.0
        %v1717 = vmax.f32 %v1638, 0.0
        %v1718 = vmax.f32 %v1640, 0.0
        %v1719 = vmax.f32 %v1642, 0.0
        %v1720 = vmax.f32 %v1646, 0.0
        %v1721 = vmax.f32 %v1648, 0.0
        %v1722 = vmax.f32 %v1650, 0.0
        %v1723 = vmax.f32 %v1652, 0.0
        %v1724 = vmax.f32 %v1656, 0.0
        %v1725 = vmax.f32 %v1658, 0.0
        %v1726 = vmax.f32 %v1660, 0.0
        %v1727 = vmax.f32 %v1662, 0.0
        %v1728 = vpack.c.bf16 %v1666, %v1664
        %v1729 = vpack.c.bf16 %v1667, %v1665
        %v1730 = vpack.c.bf16 %v1670, %v1668
        %v1731 = vpack.c.bf16 %v1671, %v1669
        %v1732 = vpack.c.bf16 %v1674, %v1672
        %v1733 = vpack.c.bf16 %v1675, %v1673
        %v1734 = vpack.c.bf16 %v1678, %v1676
        %v1735 = vpack.c.bf16 %v1679, %v1677
        %v1736 = vpack.c.bf16 %v1682, %v1680
        %v1737 = vpack.c.bf16 %v1683, %v1681
        %v1738 = vpack.c.bf16 %v1686, %v1684
        %v1739 = vpack.c.bf16 %v1687, %v1685
        %v1740 = vpack.c.bf16 %v1690, %v1688
        %v1741 = vpack.c.bf16 %v1691, %v1689
        %v1742 = vpack.c.bf16 %v1694, %v1692
        %v1743 = vpack.c.bf16 %v1695, %v1693
        %v1744 = vpack.c.bf16 %v1698, %v1696
        %v1745 = vpack.c.bf16 %v1699, %v1697
        %v1746 = vpack.c.bf16 %v1702, %v1700
        %v1747 = vpack.c.bf16 %v1703, %v1701
        %v1748 = vpack.c.bf16 %v1706, %v1704
        %v1749 = vpack.c.bf16 %v1707, %v1705
        %v1750 = vpack.c.bf16 %v1710, %v1708
        %v1751 = vpack.c.bf16 %v1711, %v1709
        %v1752 = vpack.c.bf16 %v1714, %v1712
        %v1753 = vpack.c.bf16 %v1715, %v1713
        %v1754 = vpack.c.bf16 %v1718, %v1716
        %v1755 = vpack.c.bf16 %v1719, %v1717
        %v1756 = vpack.c.bf16 %v1722, %v1720
        %v1757 = vpack.c.bf16 %v1723, %v1721
        %v1758 = vpack.c.bf16 %v1726, %v1724
        %v1759 = vpack.c.bf16 %v1727, %v1725
        %v1760 = vld [vmem:[#allocation6 + $0x280] sm:$0xff]
        %v1761 = vld [vmem:[#allocation6 + $0x288] sm:$0xff]
        %v1762 = vld [vmem:[#allocation6 + $0x290] sm:$0xff]
        %v1763 = vld [vmem:[#allocation6 + $0x298] sm:$0xff]
        %v1764 = vld [vmem:[#allocation6 + $0x2a0] sm:$0xff]
        %v1765 = vld [vmem:[#allocation6 + $0x2a8] sm:$0xff]
        %v1766 = vld [vmem:[#allocation6 + $0x2b0] sm:$0xff]
        %v1767 = vld [vmem:[#allocation6 + $0x2b8] sm:$0xff]
        %v1768 = vld [vmem:[#allocation6 + $0x2c0] sm:$0xff]
        %v1769 = vld [vmem:[#allocation6 + $0x2c8] sm:$0xff]
        %v1770 = vld [vmem:[#allocation6 + $0x2d0] sm:$0xff]
        %v1771 = vld [vmem:[#allocation6 + $0x2d8] sm:$0xff]
        %v1772 = vld [vmem:[#allocation6 + $0x2e0] sm:$0xff]
        %v1773 = vld [vmem:[#allocation6 + $0x2e8] sm:$0xff]
        %v1774 = vld [vmem:[#allocation6 + $0x2f0] sm:$0xff]
        %v1775 = vld [vmem:[#allocation6 + $0x2f8] sm:$0xff]
        %v1776 = vld [vmem:[#allocation6 + $0x300] sm:$0xff]
        %v1777 = vld [vmem:[#allocation6 + $0x308] sm:$0xff]
        %v1778 = vld [vmem:[#allocation6 + $0x310] sm:$0xff]
        %v1779 = vld [vmem:[#allocation6 + $0x318] sm:$0xff]
        %v1780 = vld [vmem:[#allocation6 + $0x320] sm:$0xff]
        %v1781 = vld [vmem:[#allocation6 + $0x328] sm:$0xff]
        %v1782 = vld [vmem:[#allocation6 + $0x330] sm:$0xff]
        %v1783 = vld [vmem:[#allocation6 + $0x338] sm:$0xff]
        %v1784 = vld [vmem:[#allocation6 + $0x340] sm:$0xff]
        %v1785 = vld [vmem:[#allocation6 + $0x348] sm:$0xff]
        %v1786 = vld [vmem:[#allocation6 + $0x350] sm:$0xff]
        %v1787 = vld [vmem:[#allocation6 + $0x358] sm:$0xff]
        %v1788 = vld [vmem:[#allocation6 + $0x360] sm:$0xff]
        %v1789 = vld [vmem:[#allocation6 + $0x368] sm:$0xff]
        %v1790 = vld [vmem:[#allocation6 + $0x370] sm:$0xff]
        %v1791 = vld [vmem:[#allocation6 + $0x378] sm:$0xff]
        %s1792 = scalar_lea.vmem [#allocation8], 3
        %v1793 = vld [vmem:[%s1792] ss:$8 sm:$0x3]
        %v1795 = vlaneseq
        %v1796 = vshrl.u32 %v1795, 7
        %v1797 = vsub.s32 0, %v1796
        %v1798 = vrot.slane %v1793, %v1797
        %v1799 = vlaneseq
        %v1800 = vshrl.u32 %v1799, 7
        %v1801 = vsub.s32 1, %v1800
        %v1802 = vrot.slane %v1793, %v1801
        %v1837 = vunpack.c.l.b16 %v1760
        %v1838 = vunpack.c.h.b16 %v1760
        %v1839 = vunpack.c.l.b16 %v1761
        %v1840 = vunpack.c.h.b16 %v1761
        %v1841 = vunpack.c.l.b16 %v1762
        %v1842 = vunpack.c.h.b16 %v1762
        %v1843 = vunpack.c.l.b16 %v1763
        %v1844 = vunpack.c.h.b16 %v1763
        %v1845 = vunpack.c.l.b16 %v1764
        %v1846 = vunpack.c.h.b16 %v1764
        %v1847 = vunpack.c.l.b16 %v1765
        %v1848 = vunpack.c.h.b16 %v1765
        %v1849 = vunpack.c.l.b16 %v1766
        %v1850 = vunpack.c.h.b16 %v1766
        %v1851 = vunpack.c.l.b16 %v1767
        %v1852 = vunpack.c.h.b16 %v1767
        %v1853 = vunpack.c.l.b16 %v1768
        %v1854 = vunpack.c.h.b16 %v1768
        %v1855 = vunpack.c.l.b16 %v1769
        %v1856 = vunpack.c.h.b16 %v1769
        %v1857 = vunpack.c.l.b16 %v1770
        %v1858 = vunpack.c.h.b16 %v1770
        %v1859 = vunpack.c.l.b16 %v1771
        %v1860 = vunpack.c.h.b16 %v1771
        %v1861 = vunpack.c.l.b16 %v1772
        %v1862 = vunpack.c.h.b16 %v1772
        %v1863 = vunpack.c.l.b16 %v1773
        %v1864 = vunpack.c.h.b16 %v1773
        %v1865 = vunpack.c.l.b16 %v1774
        %v1866 = vunpack.c.h.b16 %v1774
        %v1867 = vunpack.c.l.b16 %v1775
        %v1868 = vunpack.c.h.b16 %v1775
        %v1869 = vunpack.c.l.b16 %v1776
        %v1870 = vunpack.c.h.b16 %v1776
        %v1871 = vunpack.c.l.b16 %v1777
        %v1872 = vunpack.c.h.b16 %v1777
        %v1873 = vunpack.c.l.b16 %v1778
        %v1874 = vunpack.c.h.b16 %v1778
        %v1875 = vunpack.c.l.b16 %v1779
        %v1876 = vunpack.c.h.b16 %v1779
        %v1877 = vunpack.c.l.b16 %v1780
        %v1878 = vunpack.c.h.b16 %v1780
        %v1879 = vunpack.c.l.b16 %v1781
        %v1880 = vunpack.c.h.b16 %v1781
        %v1881 = vunpack.c.l.b16 %v1782
        %v1882 = vunpack.c.h.b16 %v1782
        %v1883 = vunpack.c.l.b16 %v1783
        %v1884 = vunpack.c.h.b16 %v1783
        %v1885 = vunpack.c.l.b16 %v1784
        %v1886 = vunpack.c.h.b16 %v1784
        %v1887 = vunpack.c.l.b16 %v1785
        %v1888 = vunpack.c.h.b16 %v1785
        %v1889 = vunpack.c.l.b16 %v1786
        %v1890 = vunpack.c.h.b16 %v1786
        %v1891 = vunpack.c.l.b16 %v1787
        %v1892 = vunpack.c.h.b16 %v1787
        %v1893 = vunpack.c.l.b16 %v1788
        %v1894 = vunpack.c.h.b16 %v1788
        %v1895 = vunpack.c.l.b16 %v1789
        %v1896 = vunpack.c.h.b16 %v1789
        %v1897 = vunpack.c.l.b16 %v1790
        %v1898 = vunpack.c.h.b16 %v1790
        %v1899 = vunpack.c.l.b16 %v1791
        %v1900 = vunpack.c.h.b16 %v1791
        %v1901 = vpack.c.b16 %v1839, %v1837
        %v1902 = vpack.c.b16 %v1840, %v1838
        %v1903 = vpack.c.b16 %v1843, %v1841
        %v1904 = vpack.c.b16 %v1844, %v1842
        %v1905 = vpack.c.b16 %v1847, %v1845
        %v1906 = vpack.c.b16 %v1848, %v1846
        %v1907 = vpack.c.b16 %v1851, %v1849
        %v1908 = vpack.c.b16 %v1852, %v1850
        %v1909 = vpack.c.b16 %v1855, %v1853
        %v1910 = vpack.c.b16 %v1856, %v1854
        %v1911 = vpack.c.b16 %v1859, %v1857
        %v1912 = vpack.c.b16 %v1860, %v1858
        %v1913 = vpack.c.b16 %v1863, %v1861
        %v1914 = vpack.c.b16 %v1864, %v1862
        %v1915 = vpack.c.b16 %v1867, %v1865
        %v1916 = vpack.c.b16 %v1868, %v1866
        %v1917 = vpack.c.b16 %v1871, %v1869
        %v1918 = vpack.c.b16 %v1872, %v1870
        %v1919 = vpack.c.b16 %v1875, %v1873
        %v1920 = vpack.c.b16 %v1876, %v1874
        %v1921 = vpack.c.b16 %v1879, %v1877
        %v1922 = vpack.c.b16 %v1880, %v1878
        %v1923 = vpack.c.b16 %v1883, %v1881
        %v1924 = vpack.c.b16 %v1884, %v1882
        %v1925 = vpack.c.b16 %v1887, %v1885
        %v1926 = vpack.c.b16 %v1888, %v1886
        %v1927 = vpack.c.b16 %v1891, %v1889
        %v1928 = vpack.c.b16 %v1892, %v1890
        %v1929 = vpack.c.b16 %v1895, %v1893
        %v1930 = vpack.c.b16 %v1896, %v1894
        %v1931 = vpack.c.b16 %v1899, %v1897
        %v1932 = vpack.c.b16 %v1900, %v1898
        %1965 = vmatprep.subr.bf16.mxu0 %v1902
        %1966 = vmatpush1.bf16.msra.mxu0 %v1901
        %1967 = vmatprep.subr.bf16.mxu0 %v1904
        %1968 = vmatpush1.bf16.msra.mxu0 %v1903
        %1969 = vmatprep.subr.bf16.mxu0 %v1906
        %1970 = vmatpush1.bf16.msra.mxu0 %v1905
        %1971 = vmatprep.subr.bf16.mxu0 %v1908
        %1972 = vmatpush1.bf16.msra.mxu0 %v1907
        %1973 = vmatprep.subr.bf16.mxu0 %v1910
        %1974 = vmatpush1.bf16.msra.mxu0 %v1909
        %1975 = vmatprep.subr.bf16.mxu0 %v1912
        %1976 = vmatpush1.bf16.msra.mxu0 %v1911
        %1977 = vmatprep.subr.bf16.mxu0 %v1914
        %1978 = vmatpush1.bf16.msra.mxu0 %v1913
        %1979 = vmatprep.subr.bf16.mxu0 %v1916
        %1980 = vmatpush1.bf16.msra.mxu0 %v1915
        %1981 = vmatprep.subr.bf16.mxu0 %v1918
        %1982 = vmatpush1.bf16.msra.mxu0 %v1917
        %1983 = vmatprep.subr.bf16.mxu0 %v1920
        %1984 = vmatpush1.bf16.msra.mxu0 %v1919
        %1985 = vmatprep.subr.bf16.mxu0 %v1922
        %1986 = vmatpush1.bf16.msra.mxu0 %v1921
        %1987 = vmatprep.subr.bf16.mxu0 %v1924
        %1988 = vmatpush1.bf16.msra.mxu0 %v1923
        %1989 = vmatprep.subr.bf16.mxu0 %v1926
        %1990 = vmatpush1.bf16.msra.mxu0 %v1925
        %1991 = vmatprep.subr.bf16.mxu0 %v1928
        %1992 = vmatpush1.bf16.msra.mxu0 %v1927
        %1993 = vmatprep.subr.bf16.mxu0 %v1930
        %1994 = vmatpush1.bf16.msra.mxu0 %v1929
        %1995 = vmatprep.subr.bf16.mxu0 %v1932
        %1996 = vmatpush1.bf16.msra.mxu0 %v1931
        %1997 = vmatprep.mubr.bf16.mxu0 %v1729
        %1998 = vmatmul.mubr.bf16.gmra.mrb[0].mxu0 %v1728
        %v1999 = vpop.f32.mrb[0].mxu0
        %v2000 = vadd.f32 %v1798, %v1999
        %v2001 = vpop.f32.mrb[0].mxu0
        %v2002 = vadd.f32 %v1802, %v2001
        %v2003 = vpop.f32.mrb[0].mxu0
        %v2004 = vadd.f32 %v1798, %v2003
        %v2005 = vpop.f32.mrb[0].mxu0
        %v2006 = vadd.f32 %v1802, %v2005
        %2007 = vmatprep.mubr.bf16.mxu0 %v1731
        %2008 = vmatmul.mubr.bf16.gmra.mrb[0].mxu0 %v1730
        %v2009 = vpop.f32.mrb[0].mxu0
        %v2010 = vadd.f32 %v1798, %v2009
        %v2011 = vpop.f32.mrb[0].mxu0
        %v2012 = vadd.f32 %v1802, %v2011
        %v2013 = vpop.f32.mrb[0].mxu0
        %v2014 = vadd.f32 %v1798, %v2013
        %v2015 = vpop.f32.mrb[0].mxu0
        %v2016 = vadd.f32 %v1802, %v2015
        %2017 = vmatprep.mubr.bf16.mxu0 %v1733
        %2018 = vmatmul.mubr.bf16.gmra.mrb[0].mxu0 %v1732
        %v2019 = vpop.f32.mrb[0].mxu0
        %v2020 = vadd.f32 %v1798, %v2019
        %v2021 = vpop.f32.mrb[0].mxu0
        %v2022 = vadd.f32 %v1802, %v2021
        %v2023 = vpop.f32.mrb[0].mxu0
        %v2024 = vadd.f32 %v1798, %v2023
        %v2025 = vpop.f32.mrb[0].mxu0
        %v2026 = vadd.f32 %v1802, %v2025
        %2027 = vmatprep.mubr.bf16.mxu0 %v1735
        %2028 = vmatmul.mubr.bf16.gmra.mrb[0].mxu0 %v1734
        %v2029 = vpop.f32.mrb[0].mxu0
        %v2030 = vadd.f32 %v1798, %v2029
        %v2031 = vpop.f32.mrb[0].mxu0
        %v2032 = vadd.f32 %v1802, %v2031
        %v2033 = vpop.f32.mrb[0].mxu0
        %v2034 = vadd.f32 %v1798, %v2033
        %v2035 = vpop.f32.mrb[0].mxu0
        %v2036 = vadd.f32 %v1802, %v2035
        %2037 = vmatprep.mubr.bf16.mxu0 %v1737
        %2038 = vmatmul.mubr.bf16.gmra.mrb[0].mxu0 %v1736
        %v2039 = vpop.f32.mrb[0].mxu0
        %v2040 = vadd.f32 %v1798, %v2039
        %v2041 = vpop.f32.mrb[0].mxu0
        %v2042 = vadd.f32 %v1802, %v2041
        %v2043 = vpop.f32.mrb[0].mxu0
        %v2044 = vadd.f32 %v1798, %v2043
        %v2045 = vpop.f32.mrb[0].mxu0
        %v2046 = vadd.f32 %v1802, %v2045
        %2047 = vmatprep.mubr.bf16.mxu0 %v1739
        %2048 = vmatmul.mubr.bf16.gmra.mrb[0].mxu0 %v1738
        %v2049 = vpop.f32.mrb[0].mxu0
        %v2050 = vadd.f32 %v1798, %v2049
        %v2051 = vpop.f32.mrb[0].mxu0
        %v2052 = vadd.f32 %v1802, %v2051
        %v2053 = vpop.f32.mrb[0].mxu0
        %v2054 = vadd.f32 %v1798, %v2053
        %v2055 = vpop.f32.mrb[0].mxu0
        %v2056 = vadd.f32 %v1802, %v2055
        %2057 = vmatprep.mubr.bf16.mxu0 %v1741
        %2058 = vmatmul.mubr.bf16.gmra.mrb[0].mxu0 %v1740
        %v2059 = vpop.f32.mrb[0].mxu0
        %v2060 = vadd.f32 %v1798, %v2059
        %v2061 = vpop.f32.mrb[0].mxu0
        %v2062 = vadd.f32 %v1802, %v2061
        %v2063 = vpop.f32.mrb[0].mxu0
        %v2064 = vadd.f32 %v1798, %v2063
        %v2065 = vpop.f32.mrb[0].mxu0
        %v2066 = vadd.f32 %v1802, %v2065
        %2067 = vmatprep.mubr.bf16.mxu0 %v1743
        %2068 = vmatmul.mubr.bf16.gmra.mrb[0].mxu0 %v1742
        %v2069 = vpop.f32.mrb[0].mxu0
        %v2070 = vadd.f32 %v1798, %v2069
        %v2071 = vpop.f32.mrb[0].mxu0
        %v2072 = vadd.f32 %v1802, %v2071
        %v2073 = vpop.f32.mrb[0].mxu0
        %v2074 = vadd.f32 %v1798, %v2073
        %v2075 = vpop.f32.mrb[0].mxu0
        %v2076 = vadd.f32 %v1802, %v2075
        %2077 = vmatprep.mubr.bf16.mxu0 %v1745
        %2078 = vmatmul.mubr.bf16.gmra.mrb[0].mxu0 %v1744
        %v2079 = vpop.f32.mrb[0].mxu0
        %v2080 = vadd.f32 %v1798, %v2079
        %v2081 = vpop.f32.mrb[0].mxu0
        %v2082 = vadd.f32 %v1802, %v2081
        %v2083 = vpop.f32.mrb[0].mxu0
        %v2084 = vadd.f32 %v1798, %v2083
        %v2085 = vpop.f32.mrb[0].mxu0
        %v2086 = vadd.f32 %v1802, %v2085
        %2087 = vmatprep.mubr.bf16.mxu0 %v1747
        %2088 = vmatmul.mubr.bf16.gmra.mrb[0].mxu0 %v1746
        %v2089 = vpop.f32.mrb[0].mxu0
        %v2090 = vadd.f32 %v1798, %v2089
        %v2091 = vpop.f32.mrb[0].mxu0
        %v2092 = vadd.f32 %v1802, %v2091
        %v2093 = vpop.f32.mrb[0].mxu0
        %v2094 = vadd.f32 %v1798, %v2093
        %v2095 = vpop.f32.mrb[0].mxu0
        %v2096 = vadd.f32 %v1802, %v2095
        %2097 = vmatprep.mubr.bf16.mxu0 %v1749
        %2098 = vmatmul.mubr.bf16.gmra.mrb[0].mxu0 %v1748
        %v2099 = vpop.f32.mrb[0].mxu0
        %v2100 = vadd.f32 %v1798, %v2099
        %v2101 = vpop.f32.mrb[0].mxu0
        %v2102 = vadd.f32 %v1802, %v2101
        %v2103 = vpop.f32.mrb[0].mxu0
        %v2104 = vadd.f32 %v1798, %v2103
        %v2105 = vpop.f32.mrb[0].mxu0
        %v2106 = vadd.f32 %v1802, %v2105
        %2107 = vmatprep.mubr.bf16.mxu0 %v1751
        %2108 = vmatmul.mubr.bf16.gmra.mrb[0].mxu0 %v1750
        %v2109 = vpop.f32.mrb[0].mxu0
        %v2110 = vadd.f32 %v1798, %v2109
        %v2111 = vpop.f32.mrb[0].mxu0
        %v2112 = vadd.f32 %v1802, %v2111
        %v2113 = vpop.f32.mrb[0].mxu0
        %v2114 = vadd.f32 %v1798, %v2113
        %v2115 = vpop.f32.mrb[0].mxu0
        %v2116 = vadd.f32 %v1802, %v2115
        %2117 = vmatprep.mubr.bf16.mxu0 %v1753
        %2118 = vmatmul.mubr.bf16.gmra.mrb[0].mxu0 %v1752
        %v2119 = vpop.f32.mrb[0].mxu0
        %v2120 = vadd.f32 %v1798, %v2119
        %v2121 = vpop.f32.mrb[0].mxu0
        %v2122 = vadd.f32 %v1802, %v2121
        %v2123 = vpop.f32.mrb[0].mxu0
        %v2124 = vadd.f32 %v1798, %v2123
        %v2125 = vpop.f32.mrb[0].mxu0
        %v2126 = vadd.f32 %v1802, %v2125
        %2127 = vmatprep.mubr.bf16.mxu0 %v1755
        %2128 = vmatmul.mubr.bf16.gmra.mrb[0].mxu0 %v1754
        %v2129 = vpop.f32.mrb[0].mxu0
        %v2130 = vadd.f32 %v1798, %v2129
        %v2131 = vpop.f32.mrb[0].mxu0
        %v2132 = vadd.f32 %v1802, %v2131
        %v2133 = vpop.f32.mrb[0].mxu0
        %v2134 = vadd.f32 %v1798, %v2133
        %v2135 = vpop.f32.mrb[0].mxu0
        %v2136 = vadd.f32 %v1802, %v2135
        %2137 = vmatprep.mubr.bf16.mxu0 %v1757
        %2138 = vmatmul.mubr.bf16.gmra.mrb[0].mxu0 %v1756
        %v2139 = vpop.f32.mrb[0].mxu0
        %v2140 = vadd.f32 %v1798, %v2139
        %v2141 = vpop.f32.mrb[0].mxu0
        %v2142 = vadd.f32 %v1802, %v2141
        %v2143 = vpop.f32.mrb[0].mxu0
        %v2144 = vadd.f32 %v1798, %v2143
        %v2145 = vpop.f32.mrb[0].mxu0
        %v2146 = vadd.f32 %v1802, %v2145
        %2147 = vmatprep.mubr.bf16.mxu0 %v1759
        %2148 = vmatmul.mubr.bf16.gmra.mrb[0].mxu0 %v1758
        %v2149 = vpop.f32.mrb[0].mxu0
        %v2150 = vadd.f32 %v1798, %v2149
        %v2151 = vpop.f32.mrb[0].mxu0
        %v2152 = vadd.f32 %v1802, %v2151
        %v2153 = vpop.f32.mrb[0].mxu0
        %v2154 = vadd.f32 %v1798, %v2153
        %v2155 = vpop.f32.mrb[0].mxu0
        %v2156 = vadd.f32 %v1802, %v2155
        %2157 = vdwg.mxu0
        %v2158 = vmax.f32 %v2000, 0.0
        %v2159 = vmax.f32 %v2002, 0.0
        %v2160 = vmax.f32 %v2004, 0.0
        %v2161 = vmax.f32 %v2006, 0.0
        %v2162 = vmax.f32 %v2010, 0.0
        %v2163 = vmax.f32 %v2012, 0.0
        %v2164 = vmax.f32 %v2014, 0.0
        %v2165 = vmax.f32 %v2016, 0.0
        %v2166 = vmax.f32 %v2020, 0.0
        %v2167 = vmax.f32 %v2022, 0.0
        %v2168 = vmax.f32 %v2024, 0.0
        %v2169 = vmax.f32 %v2026, 0.0
        %v2170 = vmax.f32 %v2030, 0.0
        %v2171 = vmax.f32 %v2032, 0.0
        %v2172 = vmax.f32 %v2034, 0.0
        %v2173 = vmax.f32 %v2036, 0.0
        %v2174 = vmax.f32 %v2040, 0.0
        %v2175 = vmax.f32 %v2042, 0.0
        %v2176 = vmax.f32 %v2044, 0.0
        %v2177 = vmax.f32 %v2046, 0.0
        %v2178 = vmax.f32 %v2050, 0.0
        %v2179 = vmax.f32 %v2052, 0.0
        %v2180 = vmax.f32 %v2054, 0.0
        %v2181 = vmax.f32 %v2056, 0.0
        %v2182 = vmax.f32 %v2060, 0.0
        %v2183 = vmax.f32 %v2062, 0.0
        %v2184 = vmax.f32 %v2064, 0.0
        %v2185 = vmax.f32 %v2066, 0.0
        %v2186 = vmax.f32 %v2070, 0.0
        %v2187 = vmax.f32 %v2072, 0.0
        %v2188 = vmax.f32 %v2074, 0.0
        %v2189 = vmax.f32 %v2076, 0.0
        %v2190 = vmax.f32 %v2080, 0.0
        %v2191 = vmax.f32 %v2082, 0.0
        %v2192 = vmax.f32 %v2084, 0.0
        %v2193 = vmax.f32 %v2086, 0.0
        %v2194 = vmax.f32 %v2090, 0.0
        %v2195 = vmax.f32 %v2092, 0.0
        %v2196 = vmax.f32 %v2094, 0.0
        %v2197 = vmax.f32 %v2096, 0.0
        %v2198 = vmax.f32 %v2100, 0.0
        %v2199 = vmax.f32 %v2102, 0.0
        %v2200 = vmax.f32 %v2104, 0.0
        %v2201 = vmax.f32 %v2106, 0.0
        %v2202 = vmax.f32 %v2110, 0.0
        %v2203 = vmax.f32 %v2112, 0.0
        %v2204 = vmax.f32 %v2114, 0.0
        %v2205 = vmax.f32 %v2116, 0.0
        %v2206 = vmax.f32 %v2120, 0.0
        %v2207 = vmax.f32 %v2122, 0.0
        %v2208 = vmax.f32 %v2124, 0.0
        %v2209 = vmax.f32 %v2126, 0.0
        %v2210 = vmax.f32 %v2130, 0.0
        %v2211 = vmax.f32 %v2132, 0.0
        %v2212 = vmax.f32 %v2134, 0.0
        %v2213 = vmax.f32 %v2136, 0.0
        %v2214 = vmax.f32 %v2140, 0.0
        %v2215 = vmax.f32 %v2142, 0.0
        %v2216 = vmax.f32 %v2144, 0.0
        %v2217 = vmax.f32 %v2146, 0.0
        %v2218 = vmax.f32 %v2150, 0.0
        %v2219 = vmax.f32 %v2152, 0.0
        %v2220 = vmax.f32 %v2154, 0.0
        %v2221 = vmax.f32 %v2156, 0.0
        %v2222 = vpack.c.bf16 %v2160, %v2158
        %v2223 = vpack.c.bf16 %v2161, %v2159
        %v2224 = vpack.c.bf16 %v2164, %v2162
        %v2225 = vpack.c.bf16 %v2165, %v2163
        %v2226 = vpack.c.bf16 %v2168, %v2166
        %v2227 = vpack.c.bf16 %v2169, %v2167
        %v2228 = vpack.c.bf16 %v2172, %v2170
        %v2229 = vpack.c.bf16 %v2173, %v2171
        %v2230 = vpack.c.bf16 %v2176, %v2174
        %v2231 = vpack.c.bf16 %v2177, %v2175
        %v2232 = vpack.c.bf16 %v2180, %v2178
        %v2233 = vpack.c.bf16 %v2181, %v2179
        %v2234 = vpack.c.bf16 %v2184, %v2182
        %v2235 = vpack.c.bf16 %v2185, %v2183
        %v2236 = vpack.c.bf16 %v2188, %v2186
        %v2237 = vpack.c.bf16 %v2189, %v2187
        %v2238 = vpack.c.bf16 %v2192, %v2190
        %v2239 = vpack.c.bf16 %v2193, %v2191
        %v2240 = vpack.c.bf16 %v2196, %v2194
        %v2241 = vpack.c.bf16 %v2197, %v2195
        %v2242 = vpack.c.bf16 %v2200, %v2198
        %v2243 = vpack.c.bf16 %v2201, %v2199
        %v2244 = vpack.c.bf16 %v2204, %v2202
        %v2245 = vpack.c.bf16 %v2205, %v2203
        %v2246 = vpack.c.bf16 %v2208, %v2206
        %v2247 = vpack.c.bf16 %v2209, %v2207
        %v2248 = vpack.c.bf16 %v2212, %v2210
        %v2249 = vpack.c.bf16 %v2213, %v2211
        %v2250 = vpack.c.bf16 %v2216, %v2214
        %v2251 = vpack.c.bf16 %v2217, %v2215
        %v2252 = vpack.c.bf16 %v2220, %v2218
        %v2253 = vpack.c.bf16 %v2221, %v2219
        %v2254 = vld [vmem:[#allocation6 + $0x380] sm:$0xf]
        %v2255 = vld [vmem:[#allocation6 + $0x388] sm:$0xf]
        %v2256 = vld [vmem:[#allocation6 + $0x390] sm:$0xf]
        %v2257 = vld [vmem:[#allocation6 + $0x398] sm:$0xf]
        %v2258 = vld [vmem:[#allocation6 + $0x3a0] sm:$0xf]
        %v2259 = vld [vmem:[#allocation6 + $0x3a8] sm:$0xf]
        %v2260 = vld [vmem:[#allocation6 + $0x3b0] sm:$0xf]
        %v2261 = vld [vmem:[#allocation6 + $0x3b8] sm:$0xf]
        %v2262 = vld [vmem:[#allocation6 + $0x3c0] sm:$0xf]
        %v2263 = vld [vmem:[#allocation6 + $0x3c8] sm:$0xf]
        %v2264 = vld [vmem:[#allocation6 + $0x3d0] sm:$0xf]
        %v2265 = vld [vmem:[#allocation6 + $0x3d8] sm:$0xf]
        %v2266 = vld [vmem:[#allocation6 + $0x3e0] sm:$0xf]
        %v2267 = vld [vmem:[#allocation6 + $0x3e8] sm:$0xf]
        %v2268 = vld [vmem:[#allocation6 + $0x3f0] sm:$0xf]
        %v2269 = vld [vmem:[#allocation6 + $0x3f8] sm:$0xf]
        %v2270 = vld [vmem:[#allocation6 + $0x400] sm:$0xf]
        %v2271 = vld [vmem:[#allocation6 + $0x408] sm:$0xf]
        %v2272 = vld [vmem:[#allocation6 + $0x410] sm:$0xf]
        %v2273 = vld [vmem:[#allocation6 + $0x418] sm:$0xf]
        %v2274 = vld [vmem:[#allocation6 + $0x420] sm:$0xf]
        %v2275 = vld [vmem:[#allocation6 + $0x428] sm:$0xf]
        %v2276 = vld [vmem:[#allocation6 + $0x430] sm:$0xf]
        %v2277 = vld [vmem:[#allocation6 + $0x438] sm:$0xf]
        %v2278 = vld [vmem:[#allocation6 + $0x440] sm:$0xf]
        %v2279 = vld [vmem:[#allocation6 + $0x448] sm:$0xf]
        %v2280 = vld [vmem:[#allocation6 + $0x450] sm:$0xf]
        %v2281 = vld [vmem:[#allocation6 + $0x458] sm:$0xf]
        %v2282 = vld [vmem:[#allocation6 + $0x460] sm:$0xf]
        %v2283 = vld [vmem:[#allocation6 + $0x468] sm:$0xf]
        %v2284 = vld [vmem:[#allocation6 + $0x470] sm:$0xf]
        %v2285 = vld [vmem:[#allocation6 + $0x478] sm:$0xf]
        %v2286 = vld [vmem:[#allocation8 + $0x4] ss:$0 sm:$0xff]
        %v2319 = vunpack.c.l.b16 %v2254
        %v2320 = vunpack.c.l.b16 %v2255
        %v2321 = vunpack.c.l.b16 %v2256
        %v2322 = vunpack.c.l.b16 %v2257
        %v2323 = vunpack.c.l.b16 %v2258
        %v2324 = vunpack.c.l.b16 %v2259
        %v2325 = vunpack.c.l.b16 %v2260
        %v2326 = vunpack.c.l.b16 %v2261
        %v2327 = vunpack.c.l.b16 %v2262
        %v2328 = vunpack.c.l.b16 %v2263
        %v2329 = vunpack.c.l.b16 %v2264
        %v2330 = vunpack.c.l.b16 %v2265
        %v2331 = vunpack.c.l.b16 %v2266
        %v2332 = vunpack.c.l.b16 %v2267
        %v2333 = vunpack.c.l.b16 %v2268
        %v2334 = vunpack.c.l.b16 %v2269
        %v2335 = vunpack.c.l.b16 %v2270
        %v2336 = vunpack.c.l.b16 %v2271
        %v2337 = vunpack.c.l.b16 %v2272
        %v2338 = vunpack.c.l.b16 %v2273
        %v2339 = vunpack.c.l.b16 %v2274
        %v2340 = vunpack.c.l.b16 %v2275
        %v2341 = vunpack.c.l.b16 %v2276
        %v2342 = vunpack.c.l.b16 %v2277
        %v2343 = vunpack.c.l.b16 %v2278
        %v2344 = vunpack.c.l.b16 %v2279
        %v2345 = vunpack.c.l.b16 %v2280
        %v2346 = vunpack.c.l.b16 %v2281
        %v2347 = vunpack.c.l.b16 %v2282
        %v2348 = vunpack.c.l.b16 %v2283
        %v2349 = vunpack.c.l.b16 %v2284
        %v2350 = vunpack.c.l.b16 %v2285
        %v2351 = vpack.c.b16 %v2320, %v2319
        %v2352 = vpack.c.b16 %v2322, %v2321
        %v2353 = vpack.c.b16 %v2324, %v2323
        %v2354 = vpack.c.b16 %v2326, %v2325
        %v2355 = vpack.c.b16 %v2328, %v2327
        %v2356 = vpack.c.b16 %v2330, %v2329
        %v2357 = vpack.c.b16 %v2332, %v2331
        %v2358 = vpack.c.b16 %v2334, %v2333
        %v2359 = vpack.c.b16 %v2336, %v2335
        %v2360 = vpack.c.b16 %v2338, %v2337
        %v2361 = vpack.c.b16 %v2340, %v2339
        %v2362 = vpack.c.b16 %v2342, %v2341
        %v2363 = vpack.c.b16 %v2344, %v2343
        %v2364 = vpack.c.b16 %v2346, %v2345
        %v2365 = vpack.c.b16 %v2348, %v2347
        %v2366 = vpack.c.b16 %v2350, %v2349
        %2383 = vmatprep.subr.bf16.mxu0 0
        %2384 = vmatpush1.bf16.msra.mxu0 %v2351
        %2385 = vmatprep.subr.bf16.mxu0 0
        %2386 = vmatpush1.bf16.msra.mxu0 %v2352
        %2387 = vmatprep.subr.bf16.mxu0 0
        %2388 = vmatpush1.bf16.msra.mxu0 %v2353
        %2389 = vmatprep.subr.bf16.mxu0 0
        %2390 = vmatpush1.bf16.msra.mxu0 %v2354
        %2391 = vmatprep.subr.bf16.mxu0 0
        %2392 = vmatpush1.bf16.msra.mxu0 %v2355
        %2393 = vmatprep.subr.bf16.mxu0 0
        %2394 = vmatpush1.bf16.msra.mxu0 %v2356
        %2395 = vmatprep.subr.bf16.mxu0 0
        %2396 = vmatpush1.bf16.msra.mxu0 %v2357
        %2397 = vmatprep.subr.bf16.mxu0 0
        %2398 = vmatpush1.bf16.msra.mxu0 %v2358
        %2399 = vmatprep.subr.bf16.mxu0 0
        %2400 = vmatpush1.bf16.msra.mxu0 %v2359
        %2401 = vmatprep.subr.bf16.mxu0 0
        %2402 = vmatpush1.bf16.msra.mxu0 %v2360
        %2403 = vmatprep.subr.bf16.mxu0 0
        %2404 = vmatpush1.bf16.msra.mxu0 %v2361
        %2405 = vmatprep.subr.bf16.mxu0 0
        %2406 = vmatpush1.bf16.msra.mxu0 %v2362
        %2407 = vmatprep.subr.bf16.mxu0 0
        %2408 = vmatpush1.bf16.msra.mxu0 %v2363
        %2409 = vmatprep.subr.bf16.mxu0 0
        %2410 = vmatpush1.bf16.msra.mxu0 %v2364
        %2411 = vmatprep.subr.bf16.mxu0 0
        %2412 = vmatpush1.bf16.msra.mxu0 %v2365
        %2413 = vmatprep.subr.bf16.mxu0 0
        %2414 = vmatpush1.bf16.msra.mxu0 %v2366
        %2415 = vmatprep.mubr.bf16.mxu0 %v2223
        %2416 = vmatmul.mubr.bf16.gmra.mrb[0].mxu0 %v2222
        %v2417 = vpop.f32.mrb[0].mxu0
        %v2418 = vadd.f32 %v2286, %v2417
        %v2419 = vpop.f32.mrb[0].mxu0
        %v2420 = vpop.f32.mrb[0].mxu0
        %v2421 = vadd.f32 %v2286, %v2420
        %v2422 = vpop.f32.mrb[0].mxu0
        %2423 = vmatprep.mubr.bf16.mxu0 %v2225
        %2424 = vmatmul.mubr.bf16.gmra.mrb[0].mxu0 %v2224
        %v2425 = vpop.f32.mrb[0].mxu0
        %v2426 = vadd.f32 %v2286, %v2425
        %v2427 = vpop.f32.mrb[0].mxu0
        %v2428 = vpop.f32.mrb[0].mxu0
        %v2429 = vadd.f32 %v2286, %v2428
        %v2430 = vpop.f32.mrb[0].mxu0
        %2431 = vmatprep.mubr.bf16.mxu0 %v2227
        %2432 = vmatmul.mubr.bf16.gmra.mrb[0].mxu0 %v2226
        %v2433 = vpop.f32.mrb[0].mxu0
        %v2434 = vadd.f32 %v2286, %v2433
        %v2435 = vpop.f32.mrb[0].mxu0
        %v2436 = vpop.f32.mrb[0].mxu0
        %v2437 = vadd.f32 %v2286, %v2436
        %v2438 = vpop.f32.mrb[0].mxu0
        %2439 = vmatprep.mubr.bf16.mxu0 %v2229
        %2440 = vmatmul.mubr.bf16.gmra.mrb[0].mxu0 %v2228
        %v2441 = vpop.f32.mrb[0].mxu0
        %v2442 = vadd.f32 %v2286, %v2441
        %v2443 = vpop.f32.mrb[0].mxu0
        %v2444 = vpop.f32.mrb[0].mxu0
        %v2445 = vadd.f32 %v2286, %v2444
        %v2446 = vpop.f32.mrb[0].mxu0
        %2447 = vmatprep.mubr.bf16.mxu0 %v2231
        %2448 = vmatmul.mubr.bf16.gmra.mrb[0].mxu0 %v2230
        %v2449 = vpop.f32.mrb[0].mxu0
        %v2450 = vadd.f32 %v2286, %v2449
        %v2451 = vpop.f32.mrb[0].mxu0
        %v2452 = vpop.f32.mrb[0].mxu0
        %v2453 = vadd.f32 %v2286, %v2452
        %v2454 = vpop.f32.mrb[0].mxu0
        %2455 = vmatprep.mubr.bf16.mxu0 %v2233
        %2456 = vmatmul.mubr.bf16.gmra.mrb[0].mxu0 %v2232
        %v2457 = vpop.f32.mrb[0].mxu0
        %v2458 = vadd.f32 %v2286, %v2457
        %v2459 = vpop.f32.mrb[0].mxu0
        %v2460 = vpop.f32.mrb[0].mxu0
        %v2461 = vadd.f32 %v2286, %v2460
        %v2462 = vpop.f32.mrb[0].mxu0
        %2463 = vmatprep.mubr.bf16.mxu0 %v2235
        %2464 = vmatmul.mubr.bf16.gmra.mrb[0].mxu0 %v2234
        %v2465 = vpop.f32.mrb[0].mxu0
        %v2466 = vadd.f32 %v2286, %v2465
        %v2467 = vpop.f32.mrb[0].mxu0
        %v2468 = vpop.f32.mrb[0].mxu0
        %v2469 = vadd.f32 %v2286, %v2468
        %v2470 = vpop.f32.mrb[0].mxu0
        %2471 = vmatprep.mubr.bf16.mxu0 %v2237
        %2472 = vmatmul.mubr.bf16.gmra.mrb[0].mxu0 %v2236
        %v2473 = vpop.f32.mrb[0].mxu0
        %v2474 = vadd.f32 %v2286, %v2473
        %v2475 = vpop.f32.mrb[0].mxu0
        %v2476 = vpop.f32.mrb[0].mxu0
        %v2477 = vadd.f32 %v2286, %v2476
        %v2478 = vpop.f32.mrb[0].mxu0
        %2479 = vmatprep.mubr.bf16.mxu0 %v2239
        %2480 = vmatmul.mubr.bf16.gmra.mrb[0].mxu0 %v2238
        %v2481 = vpop.f32.mrb[0].mxu0
        %v2482 = vadd.f32 %v2286, %v2481
        %v2483 = vpop.f32.mrb[0].mxu0
        %v2484 = vpop.f32.mrb[0].mxu0
        %v2485 = vadd.f32 %v2286, %v2484
        %v2486 = vpop.f32.mrb[0].mxu0
        %2487 = vmatprep.mubr.bf16.mxu0 %v2241
        %2488 = vmatmul.mubr.bf16.gmra.mrb[0].mxu0 %v2240
        %v2489 = vpop.f32.mrb[0].mxu0
        %v2490 = vadd.f32 %v2286, %v2489
        %v2491 = vpop.f32.mrb[0].mxu0
        %v2492 = vpop.f32.mrb[0].mxu0
        %v2493 = vadd.f32 %v2286, %v2492
        %v2494 = vpop.f32.mrb[0].mxu0
        %2495 = vmatprep.mubr.bf16.mxu0 %v2243
        %2496 = vmatmul.mubr.bf16.gmra.mrb[0].mxu0 %v2242
        %v2497 = vpop.f32.mrb[0].mxu0
        %v2498 = vadd.f32 %v2286, %v2497
        %v2499 = vpop.f32.mrb[0].mxu0
        %v2500 = vpop.f32.mrb[0].mxu0
        %v2501 = vadd.f32 %v2286, %v2500
        %v2502 = vpop.f32.mrb[0].mxu0
        %2503 = vmatprep.mubr.bf16.mxu0 %v2245
        %2504 = vmatmul.mubr.bf16.gmra.mrb[0].mxu0 %v2244
        %v2505 = vpop.f32.mrb[0].mxu0
        %v2506 = vadd.f32 %v2286, %v2505
        %v2507 = vpop.f32.mrb[0].mxu0
        %v2508 = vpop.f32.mrb[0].mxu0
        %v2509 = vadd.f32 %v2286, %v2508
        %v2510 = vpop.f32.mrb[0].mxu0
        %2511 = vmatprep.mubr.bf16.mxu0 %v2247
        %2512 = vmatmul.mubr.bf16.gmra.mrb[0].mxu0 %v2246
        %v2513 = vpop.f32.mrb[0].mxu0
        %v2514 = vadd.f32 %v2286, %v2513
        %v2515 = vpop.f32.mrb[0].mxu0
        %v2516 = vpop.f32.mrb[0].mxu0
        %v2517 = vadd.f32 %v2286, %v2516
        %v2518 = vpop.f32.mrb[0].mxu0
        %2519 = vmatprep.mubr.bf16.mxu0 %v2249
        %2520 = vmatmul.mubr.bf16.gmra.mrb[0].mxu0 %v2248
        %v2521 = vpop.f32.mrb[0].mxu0
        %v2522 = vadd.f32 %v2286, %v2521
        %v2523 = vpop.f32.mrb[0].mxu0
        %v2524 = vpop.f32.mrb[0].mxu0
        %v2525 = vadd.f32 %v2286, %v2524
        %v2526 = vpop.f32.mrb[0].mxu0
        %2527 = vmatprep.mubr.bf16.mxu0 %v2251
        %2528 = vmatmul.mubr.bf16.gmra.mrb[0].mxu0 %v2250
        %v2529 = vpop.f32.mrb[0].mxu0
        %v2530 = vadd.f32 %v2286, %v2529
        %v2531 = vpop.f32.mrb[0].mxu0
        %v2532 = vpop.f32.mrb[0].mxu0
        %v2533 = vadd.f32 %v2286, %v2532
        %v2534 = vpop.f32.mrb[0].mxu0
        %2535 = vmatprep.mubr.bf16.mxu0 %v2253
        %2536 = vmatmul.mubr.bf16.gmra.mrb[0].mxu0 %v2252
        %v2537 = vpop.f32.mrb[0].mxu0
        %v2538 = vadd.f32 %v2286, %v2537
        %v2539 = vpop.f32.mrb[0].mxu0
        %v2540 = vpop.f32.mrb[0].mxu0
        %v2541 = vadd.f32 %v2286, %v2540
        %v2542 = vpop.f32.mrb[0].mxu0
        %2543 = vdwg.mxu0
        %v2544 = vmax.f32 %v2418, 0.0
        %v2545 = vmax.f32 %v2421, 0.0
        %v2546 = vmax.f32 %v2426, 0.0
        %v2547 = vmax.f32 %v2429, 0.0
        %v2548 = vmax.f32 %v2434, 0.0
        %v2549 = vmax.f32 %v2437, 0.0
        %v2550 = vmax.f32 %v2442, 0.0
        %v2551 = vmax.f32 %v2445, 0.0
        %v2552 = vmax.f32 %v2450, 0.0
        %v2553 = vmax.f32 %v2453, 0.0
        %v2554 = vmax.f32 %v2458, 0.0
        %v2555 = vmax.f32 %v2461, 0.0
        %v2556 = vmax.f32 %v2466, 0.0
        %v2557 = vmax.f32 %v2469, 0.0
        %v2558 = vmax.f32 %v2474, 0.0
        %v2559 = vmax.f32 %v2477, 0.0
        %v2560 = vmax.f32 %v2482, 0.0
        %v2561 = vmax.f32 %v2485, 0.0
        %v2562 = vmax.f32 %v2490, 0.0
        %v2563 = vmax.f32 %v2493, 0.0
        %v2564 = vmax.f32 %v2498, 0.0
        %v2565 = vmax.f32 %v2501, 0.0
        %v2566 = vmax.f32 %v2506, 0.0
        %v2567 = vmax.f32 %v2509, 0.0
        %v2568 = vmax.f32 %v2514, 0.0
        %v2569 = vmax.f32 %v2517, 0.0
        %v2570 = vmax.f32 %v2522, 0.0
        %v2571 = vmax.f32 %v2525, 0.0
        %v2572 = vmax.f32 %v2530, 0.0
        %v2573 = vmax.f32 %v2533, 0.0
        %v2574 = vmax.f32 %v2538, 0.0
        %v2575 = vmax.f32 %v2541, 0.0
        %v2576 = vld [vmem:[#allocation8 + $0x5] ss:$0 sm:$0xff]
        %v2577 = vmul.f32 %v2544, %v2576
        %v2578 = vmul.f32 %v2545, %v2576
        %v2579 = vmul.f32 %v2546, %v2576
        %v2580 = vmul.f32 %v2547, %v2576
        %v2581 = vmul.f32 %v2548, %v2576
        %v2582 = vmul.f32 %v2549, %v2576
        %v2583 = vmul.f32 %v2550, %v2576
        %v2584 = vmul.f32 %v2551, %v2576
        %v2585 = vmul.f32 %v2552, %v2576
        %v2586 = vmul.f32 %v2553, %v2576
        %v2587 = vmul.f32 %v2554, %v2576
        %v2588 = vmul.f32 %v2555, %v2576
        %v2589 = vmul.f32 %v2556, %v2576
        %v2590 = vmul.f32 %v2557, %v2576
        %v2591 = vmul.f32 %v2558, %v2576
        %v2592 = vmul.f32 %v2559, %v2576
        %v2593 = vmul.f32 %v2560, %v2576
        %v2594 = vmul.f32 %v2561, %v2576
        %v2595 = vmul.f32 %v2562, %v2576
        %v2596 = vmul.f32 %v2563, %v2576
        %v2597 = vmul.f32 %v2564, %v2576
        %v2598 = vmul.f32 %v2565, %v2576
        %v2599 = vmul.f32 %v2566, %v2576
        %v2600 = vmul.f32 %v2567, %v2576
        %v2601 = vmul.f32 %v2568, %v2576
        %v2602 = vmul.f32 %v2569, %v2576
        %v2603 = vmul.f32 %v2570, %v2576
        %v2604 = vmul.f32 %v2571, %v2576
        %v2605 = vmul.f32 %v2572, %v2576
        %v2606 = vmul.f32 %v2573, %v2576
        %v2607 = vmul.f32 %v2574, %v2576
        %v2608 = vmul.f32 %v2575, %v2576
        %2609 = vxpose.xlu0.b32.start [1/16] %v2577, 128
        %2610 = vxpose.xlu0.b32.cont [2/16] %v2578, 128
        %2611 = vxpose.xlu0.b32.cont [3/16] %v2579, 128
        %2612 = vxpose.xlu0.b32.cont [4/16] %v2580, 128
        %2613 = vxpose.xlu0.b32.cont [5/16] %v2581, 128
        %2614 = vxpose.xlu0.b32.cont [6/16] %v2582, 128
        %2615 = vxpose.xlu0.b32.cont [7/16] %v2583, 128
        %2616 = vxpose.xlu0.b32.cont [8/16] %v2584, 128
        %2617 = vxpose.xlu0.b32.cont [9/16] %v2585, 128
        %2618 = vxpose.xlu0.b32.cont [10/16] %v2586, 128
        %2619 = vxpose.xlu0.b32.cont [11/16] %v2587, 128
        %2620 = vxpose.xlu0.b32.cont [12/16] %v2588, 128
        %2621 = vxpose.xlu0.b32.cont [13/16] %v2589, 128
        %2622 = vxpose.xlu0.b32.cont [14/16] %v2590, 128
        %2623 = vxpose.xlu0.b32.cont [15/16] %v2591, 128
        %2624 = vxpose.xlu0.b32.end [16/16] %v2592, 128
        %v2625 = vpop.trf.xlu0
        %v2626 = vpop.trf.xlu0
        %v2627 = vpop.trf.xlu0
        %v2628 = vpop.trf.xlu0
        %v2629 = vpop.trf.xlu0
        %v2630 = vpop.trf.xlu0
        %v2631 = vpop.trf.xlu0
        %v2632 = vpop.trf.xlu0
        %v2633 = vpop.trf.xlu0
        %v2634 = vpop.trf.xlu0
        %v2635 = vpop.trf.xlu0
        %v2636 = vpop.trf.xlu0
        %v2637 = vpop.trf.xlu0
        %v2638 = vpop.trf.xlu0
        %v2639 = vpop.trf.xlu0
        %v2640 = vpop.trf.xlu0
        %2641 = vxpose.xlu0.b32.start [1/16] %v2593, 128
        %2642 = vxpose.xlu0.b32.cont [2/16] %v2594, 128
        %2643 = vxpose.xlu0.b32.cont [3/16] %v2595, 128
        %2644 = vxpose.xlu0.b32.cont [4/16] %v2596, 128
        %2645 = vxpose.xlu0.b32.cont [5/16] %v2597, 128
        %2646 = vxpose.xlu0.b32.cont [6/16] %v2598, 128
        %2647 = vxpose.xlu0.b32.cont [7/16] %v2599, 128
        %2648 = vxpose.xlu0.b32.cont [8/16] %v2600, 128
        %2649 = vxpose.xlu0.b32.cont [9/16] %v2601, 128
        %2650 = vxpose.xlu0.b32.cont [10/16] %v2602, 128
        %2651 = vxpose.xlu0.b32.cont [11/16] %v2603, 128
        %2652 = vxpose.xlu0.b32.cont [12/16] %v2604, 128
        %2653 = vxpose.xlu0.b32.cont [13/16] %v2605, 128
        %2654 = vxpose.xlu0.b32.cont [14/16] %v2606, 128
        %2655 = vxpose.xlu0.b32.cont [15/16] %v2607, 128
        %2656 = vxpose.xlu0.b32.end [16/16] %v2608, 128
        %v2657 = vpop.trf.xlu0
        %v2658 = vpop.trf.xlu0
        %v2659 = vpop.trf.xlu0
        %v2660 = vpop.trf.xlu0
        %v2661 = vpop.trf.xlu0
        %v2662 = vpop.trf.xlu0
        %v2663 = vpop.trf.xlu0
        %v2664 = vpop.trf.xlu0
        %v2665 = vpop.trf.xlu0
        %v2666 = vpop.trf.xlu0
        %v2667 = vpop.trf.xlu0
        %v2668 = vpop.trf.xlu0
        %v2669 = vpop.trf.xlu0
        %v2670 = vpop.trf.xlu0
        %v2671 = vpop.trf.xlu0
        %v2672 = vpop.trf.xlu0
        %v2673 = vadd.f32 %v2625, %v2626
        %v2674 = vadd.f32 %v2673, %v2627
        %v2675 = vadd.f32 %v2674, %v2628
        %v2676 = vadd.f32 %v2675, %v2629
        %v2677 = vadd.f32 %v2676, %v2630
        %v2678 = vadd.f32 %v2677, %v2631
        %v2679 = vadd.f32 %v2678, %v2632
        %v2680 = vadd.f32 %v2679, %v2633
        %v2681 = vadd.f32 %v2680, %v2634
        %v2682 = vadd.f32 %v2681, %v2635
        %v2683 = vadd.f32 %v2682, %v2636
        %v2684 = vadd.f32 %v2683, %v2637
        %v2685 = vadd.f32 %v2684, %v2638
        %v2686 = vadd.f32 %v2685, %v2639
        %v2687 = vadd.f32 %v2686, %v2640
        %v2688 = vrot.slane %v2687, 4
        %v2689 = vadd.f32 %v2687, %v2688
        %v2690 = vrot.slane %v2689, 2
        %v2691 = vadd.f32 %v2689, %v2690
        %v2692 = vrot.slane %v2691, 1
        %v2693 = vadd.f32 %v2691, %v2692
        %v2694 = vadd.f32 %v2657, %v2658
        %v2695 = vadd.f32 %v2694, %v2659
        %v2696 = vadd.f32 %v2695, %v2660
        %v2697 = vadd.f32 %v2696, %v2661
        %v2698 = vadd.f32 %v2697, %v2662
        %v2699 = vadd.f32 %v2698, %v2663
        %v2700 = vadd.f32 %v2699, %v2664
        %v2701 = vadd.f32 %v2700, %v2665
        %v2702 = vadd.f32 %v2701, %v2666
        %v2703 = vadd.f32 %v2702, %v2667
        %v2704 = vadd.f32 %v2703, %v2668
        %v2705 = vadd.f32 %v2704, %v2669
        %v2706 = vadd.f32 %v2705, %v2670
        %v2707 = vadd.f32 %v2706, %v2671
        %v2708 = vadd.f32 %v2707, %v2672
        %v2709 = vrot.slane %v2708, 4
        %v2710 = vadd.f32 %v2708, %v2709
        %v2711 = vrot.slane %v2710, 2
        %v2712 = vadd.f32 %v2710, %v2711
        %v2713 = vrot.slane %v2712, 1
        %v2714 = vadd.f32 %v2712, %v2713
        %s2715 = sld [smem:[#allocation2]]
        %v2716 = vstv %s2715
        %v2717 = vadd.f32 %v2693, %v2716
        %v2718 = vadd.f32 %v2714, %v2716
        %v2719 = vxor.u32 %v2717, 2147483648
        %v2720 = vxor.u32 %v2718, 2147483648
        %v2721 = vmul.f32 %v2719, 1.442695
        %v2722 = vpow.pop %v2721
        %v2723 = vmul.f32 %v2720, 1.442695
        %v2724 = vpow.pop %v2723
        %v2725 = vadd.f32 %v2722, 1.0
        %v2726 = vadd.f32 %v2724, 1.0
        %v2727 = vrcp.pop %v2725
        %v2728 = vmul.f32 1.0, %v2727
        %v2729 = vrcp.pop %v2726
        %v2730 = vmul.f32 1.0, %v2729
        %v2733 = vcombine.low %v2728, %v2730
        %v2735 = vunpack.c.l.s4 1966171168
        %v2736 = vunpack.c.0.s8 %v2735
        %v2737 = vlaneseq
        %v2738 = vshrl.u32 %v2737, 7
        %v2739 = vsub.s32 %v2736, %v2738
        %v2740 = vrot.slane %v2733, %v2739
        %v2742 = vunpack.c.l.s4 1966171168
        %v2743 = vunpack.c.0.s8 %v2742
        %v2744 = vlaneseq
        %v2745 = vshrl.u32 %v2744, 7
        %v2746 = vsub.s32 %v2743, %v2745
        %v2747 = vrot.slane %v2740, %v2746
        %v2749 = vlaneseq
        %vm2750 = vcmp.ge.s32.totalorder %v2749, 0
        %vm2751 = vcmp.lt.s32.totalorder %v2749, 256
        %vm2752 = vmand %vm2750, %vm2751
        %2753 = vst.msk [vmem:[%s243] sm:$0x3] %vm2752, %v2747
        %s2754 = sand.u32 %s120, 1
        %s2755 = scalar_lea.sflag [#allocation5], %s2754
        %s2756 = sand.u32 %s120, 1
        %s2757 = smul.addr %s2756, 2
        %s2758 = scalar_lea.vmem [#allocation9], %s2757
        // Predicated region
        $region49: #{tpu_custom_call.1} parent=35 // pred_check
          %p2759 = pneg %p130
        $region50: #{tpu_custom_call.1} parent=35 // pred_check_branch
          %2761 = sbr.rel (%p2759) target = $region52
        $region51: #{tpu_custom_call.1} parent=35 // pred_region
          %s2762 = smul.u32 2, %s23
          %s2764 = ssub.s32 32, 32
          %2765 = vsyncadd %s2755, %s2764
          %s2766 = smul.addr %s2762, 16
          %s2767 = scalar_lea.hbm %s4, %s2766
          %s2769 = sshll.u32 %s2758, 4
          %s2770 = int_to_ptr.vmem [resolvable:$true] %s2769
          %2772 = dma.vmem_to_hbm [thread:$0]  %s2770, 32, %s2767, %s2755
        $region52: #{tpu_custom_call.1} parent=35 // pred_fallthru
          _
      $region36: #{tpu_custom_call.1} parent=5 // pred_fallthru
        _
      %p2773 = scmp.le.s32.totalorder 2, %s18
      // Predicated region
      $region53: #{tpu_custom_call.1} parent=5 // pred_check
        %p2774 = pneg %p2773
      $region54: #{tpu_custom_call.1} parent=5 // pred_check_branch
        %2776 = sbr.rel (%p2774) target = $region56
      $region55: #{tpu_custom_call.1} parent=5 // pred_region
        %s2777 = ssub.s32 %s18, 2
        // Predicated region
        $region57: #{tpu_custom_call.1} parent=55 // pred_check
          %p2778 = pneg %p136
        $region58: #{tpu_custom_call.1} parent=55 // pred_check_branch
          %2780 = sbr.rel (%p2778) target = $region60
        $region59: #{tpu_custom_call.1} parent=55 // pred_region
          %s2781 = sand.u32 %s121, 1
          %s2782 = scalar_lea.sflag [#allocation5], %s2781
          %s2783 = sand.u32 %s121, 1
          %s2784 = smul.addr %s2783, 2
          %s2785 = scalar_lea.vmem [#allocation9], %s2784
          %2786 = dma.done %s2782, 32
        $region60: #{tpu_custom_call.1} parent=55 // pred_fallthru
          _
      $region56: #{tpu_custom_call.1} parent=5 // pred_fallthru
        _
    $region6: #{tpu_custom_call.1} parent=1 // loop_footer
      %s22 = sadd.s32 1, %s18
    $region7: #{tpu_custom_call.1} parent=1 // loop_footer_branch
      %17 = sbr.rel target = $region3
    $region8: #{tpu_custom_call.1} parent=1 // loop_exit
      _
    %2787 = vsyncpa [#allocation4], 1
    %s2788 = scalar_lea.sflag [#allocation4], 1
    %2789 = vsyncpa %s2788, 1
    %2790 = vsyncpa [#allocation7], 1
    %2791 = vsyncpa [#allocation5], 1
    %s2792 = scalar_lea.sflag [#allocation5], 1
    %2793 = vsyncpa %s2792, 1

</llo_original>
